<compile_context>
chip_gen: v7x
topology: tpu7x:2x2x1
jax: 0.10.0
libtpu: 0.0.40
codegen_flags: <defaults>
</compile_context>

<pallas_src>
import functools

import jax
import jax.numpy as jnp
from jax import lax
from jax.experimental import pallas as pl
from jax.experimental.pallas import tpu as pltpu


# --------------------------------------------------------------------------- #
# Kernel                                                                      #
# --------------------------------------------------------------------------- #
def _lstm_kernel(x_ref, wih_ref, whh_ref, b_ref, out_ref, hN_ref, cN_ref,
                 pre_ref, *, T_real, T_blk, B_blk, H_pad, unroll):
    # x_ref:   [T_blk*B_blk, D_in]   bf16  (time-major, flattened)  streamed
    # wih_ref: [D_in, 4*H_pad] bf16, whh_ref: [H_pad, 4*H_pad] bf16,
    # b_ref:   [1, 4*H_pad] f32                                      resident
    # out_ref: [T_blk*B_blk, H_pad]                                  streamed
    # hN_ref / cN_ref: [B_blk, H_pad] f32  resident state (also final outputs)
    # pre_ref: VMEM scratch [T_blk*B_blk, 4*H_pad] f32 (hoisted projection)
    t_id = pl.program_id(1)

    # First time chunk of each batch shard: zero-init the resident h/c state.
    @pl.when(t_id == 0)
    def _():
        hN_ref[...] = jnp.zeros_like(hN_ref)
        cN_ref[...] = jnp.zeros_like(cN_ref)

    whh = whh_ref[...]

    # Hoisted input projection + bias for the whole chunk: one dense bf16 MXU
    # matmul (f32 accumulation) instead of T tiny per-step pushes.
    pre_ref[...] = (
        jnp.dot(x_ref[...], wih_ref[...], preferred_element_type=jnp.float32)
        + b_ref[...]
    )

    mask_time = (T_real % T_blk) != 0  # static: sequence padded along time?

    def step(t, carry):
        h, c = carry
        row = pl.multiple_of(t * B_blk, B_blk)
        # Only the recurrent matmul stays on the serial chain (bf16 MXU, f32 acc).
        gates = pre_ref[pl.ds(row, B_blk), :] + jnp.dot(
            h.astype(jnp.bfloat16), whh, preferred_element_type=jnp.float32
        )  # [B_blk, 4*H_pad], PyTorch gate order (i, f, g, o); lane-tile aligned.
        i_g = jax.nn.sigmoid(gates[:, 0 * H_pad:1 * H_pad])
        f_g = jax.nn.sigmoid(gates[:, 1 * H_pad:2 * H_pad])
        g_g = jnp.tanh(gates[:, 2 * H_pad:3 * H_pad])
        o_g = jax.nn.sigmoid(gates[:, 3 * H_pad:4 * H_pad])
        c_new = f_g * c + i_g * g_g
        h_new = o_g * jnp.tanh(c_new)
        # Lane-dense, unmasked 2-D store (B_blk >= 8 sublanes, H_pad % 128 == 0).
        out_ref[pl.ds(row, B_blk), :] = h_new.astype(out_ref.dtype)
        if mask_time:  # freeze the carry on padded timesteps (keeps h_n/c_n exact)
            valid = (t_id * T_blk + t) < T_real
            h_new = jnp.where(valid, h_new, h)
            c_new = jnp.where(valid, c_new, c)
        return h_new, c_new

    h_fin, c_fin = lax.fori_loop(0, T_blk, step, (hN_ref[...], cN_ref[...]),
                                 unroll=unroll)
    hN_ref[...] = h_fin
    cN_ref[...] = c_fin


# --------------------------------------------------------------------------- #
# Tiling heuristics                                                           #
# --------------------------------------------------------------------------- #
def _round_up(x, m):
    return ((x + m - 1) // m) * m


def _vmem_tile_budget_bytes():
    # Generation-aware budget: ~half of physical VMEM minus headroom
    # (v7x 64 MiB -> ~24 MiB of tiles; v5e/v6e 128 MiB -> ~56 MiB).
    try:
        cap = int(pltpu.get_tpu_info().vmem_capacity_bytes)
    except Exception:
        cap = 64 << 20
    return min(max(cap // 2 - (8 << 20), 16 << 20), 56 << 20)


def _pick_time_block(T, B_blk, D_in, H_pad, budget_bytes):
    """Largest T_blk (multiple of 8, <=256) whose tiles fit the VMEM budget."""
    per_t = B_blk * (2 * 2 * D_in        # x tile (bf16), double-buffered
                     + 2 * 4 * H_pad     # out tile (f32), double-buffered
                     + 4 * 4 * H_pad)    # pre scratch (f32)
    fixed = (2 * 2 * (D_in + H_pad) * 4 * H_pad   # bf16 W_ih^T + W_hh^T (2x buf)
             + 2 * 4 * 4 * H_pad                  # bias (f32)
             + 2 * 2 * 4 * B_blk * H_pad)         # resident h/c outputs
    avail = max(budget_bytes - fixed, 8 * per_t)
    t_blk = max(8, min(int(avail // per_t), 256))
    t_blk -= t_blk % 8
    t_blk = min(max(t_blk, 8), _round_up(T, 8))
    est_bytes = fixed + t_blk * per_t
    return int(t_blk), int(est_bytes)


def _pick_unroll(T_blk, B_blk, H_pad):
    # ~10 live f32 [B_blk, H_pad] temporaries per step (gates + h/c/gate temps).
    per_step_vregs = (10 * B_blk * H_pad + 1023) // 1024
    if per_step_vregs <= 16:
        unroll = 8
    elif per_step_vregs <= 40:
        unroll = 4
    else:
        unroll = 2
    return max(1, min(unroll, T_blk))


def _pad_gates_last(w, H, H_pad):
    """Pad each of the 4 gate blocks along the last axis from H to H_pad."""
    if H == H_pad:
        return w
    parts = []
    for k in range(4):
        g = w[..., k * H:(k + 1) * H]
        parts.append(jnp.pad(g, [(0, 0)] * (w.ndim - 1) + [(0, H_pad - H)]))
    return jnp.concatenate(parts, axis=-1)


# --------------------------------------------------------------------------- #
# Wrapper                                                                     #
# --------------------------------------------------------------------------- #
def base_rnn_forward(x, w_ih, w_hh, b_ih, b_hh, *, out_dtype=jnp.float32):
    """BaseRNN.forward hot path (eval mode).

    x: [B, T, D_in] (batch_first like PyTorch); w_ih: [4H, D_in]; w_hh: [4H, H];
    b_*: [4H].  Returns out [B, T, H], h_n [B, H], c_n [B, H].
    Set out_dtype=jnp.bfloat16 on v5e to halve the activation writeback traffic.
    """
    B, T, D_in = x.shape
    H = w_hh.shape[1]
    f32 = jnp.float32

    H_pad = _round_up(H, 128)          # lane-aligned gate slices
    B_pad = _round_up(B, 8)            # full sublane groups for the MXU

    # Batch sharding so v7x's second TensorCore is used ("parallel" grid axis).
    nb = 2 if (B_pad >= 16 and B_pad % 16 == 0) else 1
    B_blk = B_pad // nb

    budget = _vmem_tile_budget_bytes()
    T_blk, est_bytes = _pick_time_block(T, B_blk, D_in, H_pad, budget)
    T_pad = _round_up(T, T_blk)
    unroll = _pick_unroll(T_blk, B_blk, H_pad)

    # ---- Weights: transpose to [*, 4H], pad per-gate to H_pad, fold biases,
    # ---- cast matmul operands to bf16 (f32 accumulation stays in-kernel).
    wih_t = _pad_gates_last(jnp.asarray(w_ih, f32).T, H, H_pad)          # [D_in, 4H_pad]
    whh_t = _pad_gates_last(jnp.asarray(w_hh, f32).T, H, H_pad)          # [H,    4H_pad]
    whh_t = jnp.pad(whh_t, ((0, H_pad - H), (0, 0)))                     # [H_pad,4H_pad]
    bias = _pad_gates_last(jnp.asarray(b_ih + b_hh, f32)[None, :], H, H_pad)  # [1, 4H_pad]
    wih_t = wih_t.astype(jnp.bfloat16)
    whh_t = whh_t.astype(jnp.bfloat16)

    # ---- x: batch_first -> padded, batch-shard-major, time-major, flattened.
    # [B,T,D] -> [nb, T_pad*B_blk, D_in]  (shard s holds batches s*B_blk..(s+1)*B_blk-1)
    # TODO(synk): training-mode input dropout (Bernoulli mask) not implemented;
    # eval-mode nn.Dropout is the identity, which is what the hot path uses.
    x_p = jnp.pad(x.astype(f32), ((0, B_pad - B), (0, T_pad - T), (0, 0)))
    x_tm = jnp.transpose(x_p, (1, 0, 2)).reshape(T_pad, nb, B_blk, D_in)
    x_flat = jnp.transpose(x_tm, (1, 0, 2, 3)).reshape(nb, T_pad * B_blk, D_in)
    x_flat = x_flat.astype(jnp.bfloat16)

    grid = (nb, T_pad // T_blk)
    kernel = functools.partial(_lstm_kernel, T_real=T, T_blk=T_blk,
                               B_blk=B_blk, H_pad=H_pad, unroll=unroll)

    out_flat, h_n, c_n = pl.pallas_call(
        kernel,
        out_shape=(
            jax.ShapeDtypeStruct((nb, T_pad * B_blk, H_pad), out_dtype),
            jax.ShapeDtypeStruct((B_pad, H_pad), f32),
            jax.ShapeDtypeStruct((B_pad, H_pad), f32),
        ),
        grid_spec=pltpu.PrefetchScalarGridSpec(
            num_scalar_prefetch=0,
            grid=grid,
            in_specs=[
                # streamed x chunk (per batch shard, per time chunk)
                pl.BlockSpec((None, T_blk * B_blk, D_in), lambda b, i: (b, i, 0)),
                # resident weights / bias (constant index maps)
                pl.BlockSpec((D_in, 4 * H_pad), lambda b, i: (0, 0)),
                pl.BlockSpec((H_pad, 4 * H_pad), lambda b, i: (0, 0)),
                pl.BlockSpec((1, 4 * H_pad), lambda b, i: (0, 0)),
            ],
            out_specs=(
                # streamed out chunk (lane-dense 2-D tile)
                pl.BlockSpec((None, T_blk * B_blk, H_pad), lambda b, i: (b, i, 0)),
                # resident recurrent state per batch shard (accumulator pattern)
                pl.BlockSpec((B_blk, H_pad), lambda b, i: (b, 0)),
                pl.BlockSpec((B_blk, H_pad), lambda b, i: (b, 0)),
            ),
            scratch_shapes=[pltpu.VMEM((T_blk * B_blk, 4 * H_pad), f32)],
        ),
        compiler_params=pltpu.CompilerParams(
            dimension_semantics=("parallel", "arbitrary"),
            vmem_limit_bytes=int(min(max(2 * est_bytes, 32 << 20), 48 << 20)),
        ),
    )(x_flat, wih_t, whh_t, bias)

    # Undo the shard/time-major flattening and padding (wrapper-side XLA glue).
    out_tm = out_flat.reshape(nb, T_pad, B_blk, H_pad)
    out_tm = jnp.transpose(out_tm, (1, 0, 2, 3)).reshape(T_pad, B_pad, H_pad)
    out = jnp.transpose(out_tm[:T, :B, :H], (1, 0, 2))
    return out, h_n[:B, :H], c_n[:B, :H]


# --------------------------------------------------------------------------- #
# Pure-JAX reference + synthetic params                                       #
# --------------------------------------------------------------------------- #
def lstm_reference(x, w_ih, w_hh, b_ih, b_hh, *, matmul_dtype=jnp.float32):
    """Matches PyTorch nn.LSTM eval semantics; matmul_dtype mimics the kernel's
    bf16 MXU matmuls (f32 accumulation, f32 carries) when set to bfloat16."""
    B, T, _ = x.shape
    H = w_hh.shape[1]
    b = (b_ih + b_hh).astype(jnp.float32)
    wih_t = w_ih.T.astype(matmul_dtype)
    whh_t = w_hh.T.astype(matmul_dtype)
    x = x.astype(matmul_dtype)

    def step(carry, x_t):
        h, c = carry
        g = (jnp.dot(x_t, wih_t, preferred_element_type=jnp.float32)
             + jnp.dot(h.astype(matmul_dtype), whh_t,
                       preferred_element_type=jnp.float32) + b)
        i = jax.nn.sigmoid(g[:, 0 * H:1 * H])
        f = jax.nn.sigmoid(g[:, 1 * H:2 * H])
        gg = jnp.tanh(g[:, 2 * H:3 * H])
        o = jax.nn.sigmoid(g[:, 3 * H:4 * H])
        c_new = f * c + i * gg
        h_new = o * jnp.tanh(c_new)
        return (h_new, c_new), h_new

    init = (jnp.zeros((B, H), jnp.float32), jnp.zeros((B, H), jnp.float32))
    (h_n, c_n), hs = lax.scan(step, init, jnp.transpose(x, (1, 0, 2)))
    return jnp.transpose(hs, (1, 0, 2)), h_n, c_n


def init_params(key, input_size, hidden_size):
    """nn.LSTM-shaped params plus the BaseRNN forget-gate bias fill
    (bias[H:2H] = 1.0 for both bias tensors)."""
    H = hidden_size
    k1, k2, k3, k4 = jax.random.split(key, 4)
    scale = 1.0 / jnp.sqrt(jnp.float32(H))
    w_ih = jax.random.uniform(k1, (4 * H, input_size), jnp.float32, -scale, scale)
    w_hh = jax.random.uniform(k2, (4 * H, H), jnp.float32, -scale, scale)
    b_ih = jax.random.uniform(k3, (4 * H,), jnp.float32, -scale, scale)
    b_hh = jax.random.uniform(k4, (4 * H,), jnp.float32, -scale, scale)
    b_ih = b_ih.at[H:2 * H].set(1.0)
    b_hh = b_hh.at[H:2 * H].set(1.0)
    return w_ih, w_hh, b_ih, b_hh


def _check_case(key, B, T, D_in, H):
    kx, kp = jax.random.split(key)
    x = jax.random.normal(kx, (B, T, D_in), dtype=jnp.float32)
    w_ih, w_hh, b_ih, b_hh = init_params(kp, D_in, H)

    out, h_n, c_n = base_rnn_forward(x, w_ih, w_hh, b_ih, b_hh)
    jax.block_until_ready((out, h_n, c_n))
    assert out.shape == (B, T, H)
    assert h_n.shape == (B, H) and c_n.shape == (B, H)

    # Loose check vs. all-f32 reference (kernel matmuls run on the MXU in bf16).
    out_r, h_r, c_r = lstm_reference(x, w_ih, w_hh, b_ih, b_hh)
    assert float(jnp.max(jnp.abs(out - out_r))) < 2e-2
    assert float(jnp.max(jnp.abs(h_n - h_r))) < 2e-2
    assert float(jnp.max(jnp.abs(c_n - c_r))) < 2e-2

    # Tighter check vs. a bf16-matmul-matched reference.
    out_b, h_b, c_b = lstm_reference(x, w_ih, w_hh, b_ih, b_hh,
                                     matmul_dtype=jnp.bfloat16)
    assert float(jnp.max(jnp.abs(out - out_b))) < 1e-2
    assert float(jnp.max(jnp.abs(h_n - h_b))) < 1e-2
    assert float(jnp.max(jnp.abs(c_n - c_b))) < 1e-2


if __name__ == "__main__":
    key = jax.random.PRNGKey(0)
    k1, k2 = jax.random.split(key)
    # Small spec-consistent shape: batch=2, seq=8, input=16, hidden=32.
    _check_case(k1, B=2, T=8, D_in=16, H=32)
    # Exercise the batch-sharded grid ("parallel" axis) and padded-T masking.
    _check_case(k2, B=16, T=12, D_in=64, H=96)
    print("KERNEL_OK")
</pallas_src>

<mosaic_0001>
module attributes {stable_mosaic.version = 11 : i64} {
  func.func @_lstm_kernel(%arg0: i32, %arg1: i32, %arg2: memref<1x64x16xbf16, #tpu.memory_space<vmem>>, %arg3: memref<16x512xbf16, #tpu.memory_space<vmem>>, %arg4: memref<128x512xbf16, #tpu.memory_space<vmem>>, %arg5: memref<1x512xf32, #tpu.memory_space<vmem>>, %arg6: memref<1x64x128xf32, #tpu.memory_space<vmem>>, %arg7: memref<8x128xf32, #tpu.memory_space<vmem>>, %arg8: memref<8x128xf32, #tpu.memory_space<vmem>>, %arg9: memref<64x512xf32, #tpu.memory_space<vmem>>) attributes {dimension_semantics = [#tpu.dimension_semantics<parallel>, #tpu.dimension_semantics<arbitrary>], iteration_bounds = array<i64: 1, 1>, scalar_prefetch = 0 : i64, scratch_operands = 1 : i64, tpu.core_type = #tpu.core_type<tc>, window_params = [{transform_indices = @transform_0, window_bounds = array<i64: 1, 64, 16>}, {pipeline_mode = #tpu.pipeline_mode<synchronous>, transform_indices = @transform_1, window_bounds = array<i64: 16, 512>}, {pipeline_mode = #tpu.pipeline_mode<synchronous>, transform_indices = @transform_2, window_bounds = array<i64: 128, 512>}, {pipeline_mode = #tpu.pipeline_mode<synchronous>, transform_indices = @transform_3, window_bounds = array<i64: 1, 512>}, {transform_indices = @transform_4, window_bounds = array<i64: 1, 64, 128>}, {transform_indices = @transform_5, window_bounds = array<i64: 8, 128>}, {transform_indices = @transform_6, window_bounds = array<i64: 8, 128>}]} {
    %c0_i32 = arith.constant 0 : i32
    %0 = arith.cmpi eq, %arg1, %c0_i32 : i32
    %1 = arith.extui %0 : i1 to i32
    %c0_i32_0 = arith.constant 0 : i32
    %2 = arith.cmpi ne, %1, %c0_i32_0 : i32
    scf.if %2 {
      %cst_84 = arith.constant 0.000000e+00 : f32
      %304 = vector.broadcast %cst_84 : f32 to vector<8x128xf32>
      %c0_85 = arith.constant 0 : index
      %c0_86 = arith.constant 0 : index
      %305 = vector.load %arg7[%c0_85, %c0_86] : memref<8x128xf32, #tpu.memory_space<vmem>>, vector<8x128xf32>
      tpu.vector_store %arg7[%c0_85, %c0_86], %304 {strides = array<i32>} : memref<8x128xf32, #tpu.memory_space<vmem>>, vector<8x128xf32>,
      %cst_87 = arith.constant 0.000000e+00 : f32
      %306 = vector.broadcast %cst_87 : f32 to vector<8x128xf32>
      %c0_88 = arith.constant 0 : index
      %c0_89 = arith.constant 0 : index
      %307 = vector.load %arg8[%c0_88, %c0_89] : memref<8x128xf32, #tpu.memory_space<vmem>>, vector<8x128xf32>
      tpu.vector_store %arg8[%c0_88, %c0_89], %306 {strides = array<i32>} : memref<8x128xf32, #tpu.memory_space<vmem>>, vector<8x128xf32>,
    } else {
    }
    %c0 = arith.constant 0 : index
    %c0_1 = arith.constant 0 : index
    %3 = vector.load %arg4[%c0, %c0_1] : memref<128x512xbf16, #tpu.memory_space<vmem>>, vector<128x512xbf16>
    %c0_2 = arith.constant 0 : index
    %c0_3 = arith.constant 0 : index
    %c0_4 = arith.constant 0 : index
    %4 = vector.load %arg2[%c0_2, %c0_3, %c0_4] : memref<1x64x16xbf16, #tpu.memory_space<vmem>>, vector<1x64x16xbf16>
    %5 = vector.shape_cast %4 : vector<1x64x16xbf16> to vector<64x16xbf16>
    %c0_5 = arith.constant 0 : index
    %c0_6 = arith.constant 0 : index
    %6 = vector.load %arg3[%c0_5, %c0_6] : memref<16x512xbf16, #tpu.memory_space<vmem>>, vector<16x512xbf16>
    %cst = arith.constant dense<0.000000e+00> : vector<64x512xf32>
    %7 = tpu.matmul %5, %6, %cst {dimension_numbers = #tpu.dot_dimension_numbers<[1], [0], [0], [1], [0, 0, 1, 1], [], []>} : vector<64x16xbf16>, vector<16x512xbf16>, vector<64x512xf32> -> vector<64x512xf32>
    %c0_7 = arith.constant 0 : index
    %c0_8 = arith.constant 0 : index
    %8 = vector.load %arg5[%c0_7, %c0_8] : memref<1x512xf32, #tpu.memory_space<vmem>>, vector<1x512xf32>
    %9 = vector.broadcast %8 : vector<1x512xf32> to vector<64x512xf32>
    %10 = arith.addf %7, %9 : vector<64x512xf32>
    %c0_9 = arith.constant 0 : index
    %c0_10 = arith.constant 0 : index
    %11 = vector.load %arg9[%c0_9, %c0_10] : memref<64x512xf32, #tpu.memory_space<vmem>>, vector<64x512xf32>
    tpu.vector_store %arg9[%c0_9, %c0_10], %10 {strides = array<i32>} : memref<64x512xf32, #tpu.memory_space<vmem>>, vector<64x512xf32>,
    %c0_11 = arith.constant 0 : index
    %c0_12 = arith.constant 0 : index
    %12 = vector.load %arg7[%c0_11, %c0_12] : memref<8x128xf32, #tpu.memory_space<vmem>>, vector<8x128xf32>
    %c0_13 = arith.constant 0 : index
    %c0_14 = arith.constant 0 : index
    %13 = vector.load %arg8[%c0_13, %c0_14] : memref<8x128xf32, #tpu.memory_space<vmem>>, vector<8x128xf32>
    %c0_i32_15 = arith.constant 0 : i32
    %c8_i32 = arith.constant 8 : i32
    %14 = arith.muli %c0_i32_15, %c8_i32 : i32
    %15 = tpu.assume_multiple %14, 8 : i32
    %16 = arith.index_cast %15 : i32 to index
    %c0_16 = arith.constant 0 : index
    %17 = vector.load %arg9[%16, %c0_16] : memref<64x512xf32, #tpu.memory_space<vmem>>, vector<8x512xf32>
    %18 = arith.truncf %12 : vector<8x128xf32> to vector<8x128xbf16>
    %cst_17 = arith.constant dense<0.000000e+00> : vector<8x512xf32>
    %19 = tpu.matmul %18, %3, %cst_17 {dimension_numbers = #tpu.dot_dimension_numbers<[1], [0], [0], [1], [0, 0, 1, 1], [], []>} : vector<8x128xbf16>, vector<128x512xbf16>, vector<8x512xf32> -> vector<8x512xf32>
    %20 = arith.addf %17, %19 : vector<8x512xf32>
    %21 = vector.extract_strided_slice %20 {offsets = [0, 0], sizes = [8, 128], strides = [1, 1]} : vector<8x512xf32> to vector<8x128xf32>
    %22 = arith.negf %21 : vector<8x128xf32>
    %23 = math.exp %22 : vector<8x128xf32>
    %cst_18 = arith.constant 1.000000e+00 : f32
    %24 = vector.broadcast %cst_18 : f32 to vector<8x128xf32>
    %25 = arith.addf %24, %23 : vector<8x128xf32>
    %26 = arith.divf %24, %25 : vector<8x128xf32>
    %27 = vector.extract_strided_slice %20 {offsets = [0, 128], sizes = [8, 128], strides = [1, 1]} : vector<8x512xf32> to vector<8x128xf32>
    %28 = arith.negf %27 : vector<8x128xf32>
    %29 = math.exp %28 : vector<8x128xf32>
    %cst_19 = arith.constant 1.000000e+00 : f32
    %30 = vector.broadcast %cst_19 : f32 to vector<8x128xf32>
    %31 = arith.addf %30, %29 : vector<8x128xf32>
    %32 = arith.divf %30, %31 : vector<8x128xf32>
    %33 = vector.extract_strided_slice %20 {offsets = [0, 256], sizes = [8, 128], strides = [1, 1]} : vector<8x512xf32> to vector<8x128xf32>
    %34 = math.tanh %33 : vector<8x128xf32>
    %35 = vector.extract_strided_slice %20 {offsets = [0, 384], sizes = [8, 128], strides = [1, 1]} : vector<8x512xf32> to vector<8x128xf32>
    %36 = arith.negf %35 : vector<8x128xf32>
    %37 = math.exp %36 : vector<8x128xf32>
    %cst_20 = arith.constant 1.000000e+00 : f32
    %38 = vector.broadcast %cst_20 : f32 to vector<8x128xf32>
    %39 = arith.addf %38, %37 : vector<8x128xf32>
    %40 = arith.divf %38, %39 : vector<8x128xf32>
    %41 = arith.mulf %32, %13 : vector<8x128xf32>
    %42 = arith.mulf %26, %34 : vector<8x128xf32>
    %43 = arith.addf %41, %42 : vector<8x128xf32>
    %44 = math.tanh %43 : vector<8x128xf32>
    %45 = arith.mulf %40, %44 : vector<8x128xf32>
    %c0_21 = arith.constant 0 : index
    %46 = arith.index_cast %15 : i32 to index
    %c0_22 = arith.constant 0 : index
    %47 = vector.load %arg6[%c0_21, %46, %c0_22] : memref<1x64x128xf32, #tpu.memory_space<vmem>>, vector<1x8x128xf32>
    %48 = vector.shape_cast %47 : vector<1x8x128xf32> to vector<8x128xf32>
    %49 = vector.shape_cast %45 : vector<8x128xf32> to vector<1x8x128xf32>
    tpu.vector_store %arg6[%c0_21, %46, %c0_22], %49 {strides = array<i32>} : memref<1x64x128xf32, #tpu.memory_space<vmem>>, vector<1x8x128xf32>,
    %c1_i32 = arith.constant 1 : i32
    %c8_i32_23 = arith.constant 8 : i32
    %50 = arith.muli %c1_i32, %c8_i32_23 : i32
    %51 = tpu.assume_multiple %50, 8 : i32
    %52 = arith.index_cast %51 : i32 to index
    %c0_24 = arith.constant 0 : index
    %53 = vector.load %arg9[%52, %c0_24] : memref<64x512xf32, #tpu.memory_space<vmem>>, vector<8x512xf32>
    %54 = arith.truncf %45 : vector<8x128xf32> to vector<8x128xbf16>
    %cst_25 = arith.constant dense<0.000000e+00> : vector<8x512xf32>
    %55 = tpu.matmul %54, %3, %cst_25 {dimension_numbers = #tpu.dot_dimension_numbers<[1], [0], [0], [1], [0, 0, 1, 1], [], []>} : vector<8x128xbf16>, vector<128x512xbf16>, vector<8x512xf32> -> vector<8x512xf32>
    %56 = arith.addf %53, %55 : vector<8x512xf32>
    %57 = vector.extract_strided_slice %56 {offsets = [0, 0], sizes = [8, 128], strides = [1, 1]} : vector<8x512xf32> to vector<8x128xf32>
    %58 = arith.negf %57 : vector<8x128xf32>
    %59 = math.exp %58 : vector<8x128xf32>
    %cst_26 = arith.constant 1.000000e+00 : f32
    %60 = vector.broadcast %cst_26 : f32 to vector<8x128xf32>
    %61 = arith.addf %60, %59 : vector<8x128xf32>
    %62 = arith.divf %60, %61 : vector<8x128xf32>
    %63 = vector.extract_strided_slice %56 {offsets = [0, 128], sizes = [8, 128], strides = [1, 1]} : vector<8x512xf32> to vector<8x128xf32>
    %64 = arith.negf %63 : vector<8x128xf32>
    %65 = math.exp %64 : vector<8x128xf32>
    %cst_27 = arith.constant 1.000000e+00 : f32
    %66 = vector.broadcast %cst_27 : f32 to vector<8x128xf32>
    %67 = arith.addf %66, %65 : vector<8x128xf32>
    %68 = arith.divf %66, %67 : vector<8x128xf32>
    %69 = vector.extract_strided_slice %56 {offsets = [0, 256], sizes = [8, 128], strides = [1, 1]} : vector<8x512xf32> to vector<8x128xf32>
    %70 = math.tanh %69 : vector<8x128xf32>
    %71 = vector.extract_strided_slice %56 {offsets = [0, 384], sizes = [8, 128], strides = [1, 1]} : vector<8x512xf32> to vector<8x128xf32>
    %72 = arith.negf %71 : vector<8x128xf32>
    %73 = math.exp %72 : vector<8x128xf32>
    %cst_28 = arith.constant 1.000000e+00 : f32
    %74 = vector.broadcast %cst_28 : f32 to vector<8x128xf32>
    %75 = arith.addf %74, %73 : vector<8x128xf32>
    %76 = arith.divf %74, %75 : vector<8x128xf32>
    %77 = arith.mulf %68, %43 : vector<8x128xf32>
    %78 = arith.mulf %62, %70 : vector<8x128xf32>
    %79 = arith.addf %77, %78 : vector<8x128xf32>
    %80 = math.tanh %79 : vector<8x128xf32>
    %81 = arith.mulf %76, %80 : vector<8x128xf32>
    %c0_29 = arith.constant 0 : index
    %82 = arith.index_cast %51 : i32 to index
    %c0_30 = arith.constant 0 : index
    %83 = vector.load %arg6[%c0_29, %82, %c0_30] : memref<1x64x128xf32, #tpu.memory_space<vmem>>, vector<1x8x128xf32>
    %84 = vector.shape_cast %83 : vector<1x8x128xf32> to vector<8x128xf32>
    %85 = vector.shape_cast %81 : vector<8x128xf32> to vector<1x8x128xf32>
    tpu.vector_store %arg6[%c0_29, %82, %c0_30], %85 {strides = array<i32>} : memref<1x64x128xf32, #tpu.memory_space<vmem>>, vector<1x8x128xf32>,
    %c2_i32 = arith.constant 2 : i32
    %c8_i32_31 = arith.constant 8 : i32
    %86 = arith.muli %c2_i32, %c8_i32_31 : i32
    %87 = tpu.assume_multiple %86, 8 : i32
    %88 = arith.index_cast %87 : i32 to index
    %c0_32 = arith.constant 0 : index
    %89 = vector.load %arg9[%88, %c0_32] : memref<64x512xf32, #tpu.memory_space<vmem>>, vector<8x512xf32>
    %90 = arith.truncf %81 : vector<8x128xf32> to vector<8x128xbf16>
    %cst_33 = arith.constant dense<0.000000e+00> : vector<8x512xf32>
    %91 = tpu.matmul %90, %3, %cst_33 {dimension_numbers = #tpu.dot_dimension_numbers<[1], [0], [0], [1], [0, 0, 1, 1], [], []>} : vector<8x128xbf16>, vector<128x512xbf16>, vector<8x512xf32> -> vector<8x512xf32>
    %92 = arith.addf %89, %91 : vector<8x512xf32>
    %93 = vector.extract_strided_slice %92 {offsets = [0, 0], sizes = [8, 128], strides = [1, 1]} : vector<8x512xf32> to vector<8x128xf32>
    %94 = arith.negf %93 : vector<8x128xf32>
    %95 = math.exp %94 : vector<8x128xf32>
    %cst_34 = arith.constant 1.000000e+00 : f32
    %96 = vector.broadcast %cst_34 : f32 to vector<8x128xf32>
    %97 = arith.addf %96, %95 : vector<8x128xf32>
    %98 = arith.divf %96, %97 : vector<8x128xf32>
    %99 = vector.extract_strided_slice %92 {offsets = [0, 128], sizes = [8, 128], strides = [1, 1]} : vector<8x512xf32> to vector<8x128xf32>
    %100 = arith.negf %99 : vector<8x128xf32>
    %101 = math.exp %100 : vector<8x128xf32>
    %cst_35 = arith.constant 1.000000e+00 : f32
    %102 = vector.broadcast %cst_35 : f32 to vector<8x128xf32>
    %103 = arith.addf %102, %101 : vector<8x128xf32>
    %104 = arith.divf %102, %103 : vector<8x128xf32>
    %105 = vector.extract_strided_slice %92 {offsets = [0, 256], sizes = [8, 128], strides = [1, 1]} : vector<8x512xf32> to vector<8x128xf32>
    %106 = math.tanh %105 : vector<8x128xf32>
    %107 = vector.extract_strided_slice %92 {offsets = [0, 384], sizes = [8, 128], strides = [1, 1]} : vector<8x512xf32> to vector<8x128xf32>
    %108 = arith.negf %107 : vector<8x128xf32>
    %109 = math.exp %108 : vector<8x128xf32>
    %cst_36 = arith.constant 1.000000e+00 : f32
    %110 = vector.broadcast %cst_36 : f32 to vector<8x128xf32>
    %111 = arith.addf %110, %109 : vector<8x128xf32>
    %112 = arith.divf %110, %111 : vector<8x128xf32>
    %113 = arith.mulf %104, %79 : vector<8x128xf32>
    %114 = arith.mulf %98, %106 : vector<8x128xf32>
    %115 = arith.addf %113, %114 : vector<8x128xf32>
    %116 = math.tanh %115 : vector<8x128xf32>
    %117 = arith.mulf %112, %116 : vector<8x128xf32>
    %c0_37 = arith.constant 0 : index
    %118 = arith.index_cast %87 : i32 to index
    %c0_38 = arith.constant 0 : index
    %119 = vector.load %arg6[%c0_37, %118, %c0_38] : memref<1x64x128xf32, #tpu.memory_space<vmem>>, vector<1x8x128xf32>
    %120 = vector.shape_cast %119 : vector<1x8x128xf32> to vector<8x128xf32>
    %121 = vector.shape_cast %117 : vector<8x128xf32> to vector<1x8x128xf32>
    tpu.vector_store %arg6[%c0_37, %118, %c0_38], %121 {strides = array<i32>} : memref<1x64x128xf32, #tpu.memory_space<vmem>>, vector<1x8x128xf32>,
    %c3_i32 = arith.constant 3 : i32
    %c8_i32_39 = arith.constant 8 : i32
    %122 = arith.muli %c3_i32, %c8_i32_39 : i32
    %123 = tpu.assume_multiple %122, 8 : i32
    %124 = arith.index_cast %123 : i32 to index
    %c0_40 = arith.constant 0 : index
    %125 = vector.load %arg9[%124, %c0_40] : memref<64x512xf32, #tpu.memory_space<vmem>>, vector<8x512xf32>
    %126 = arith.truncf %117 : vector<8x128xf32> to vector<8x128xbf16>
    %cst_41 = arith.constant dense<0.000000e+00> : vector<8x512xf32>
    %127 = tpu.matmul %126, %3, %cst_41 {dimension_numbers = #tpu.dot_dimension_numbers<[1], [0], [0], [1], [0, 0, 1, 1], [], []>} : vector<8x128xbf16>, vector<128x512xbf16>, vector<8x512xf32> -> vector<8x512xf32>
    %128 = arith.addf %125, %127 : vector<8x512xf32>
    %129 = vector.extract_strided_slice %128 {offsets = [0, 0], sizes = [8, 128], strides = [1, 1]} : vector<8x512xf32> to vector<8x128xf32>
    %130 = arith.negf %129 : vector<8x128xf32>
    %131 = math.exp %130 : vector<8x128xf32>
    %cst_42 = arith.constant 1.000000e+00 : f32
    %132 = vector.broadcast %cst_42 : f32 to vector<8x128xf32>
    %133 = arith.addf %132, %131 : vector<8x128xf32>
    %134 = arith.divf %132, %133 : vector<8x128xf32>
    %135 = vector.extract_strided_slice %128 {offsets = [0, 128], sizes = [8, 128], strides = [1, 1]} : vector<8x512xf32> to vector<8x128xf32>
    %136 = arith.negf %135 : vector<8x128xf32>
    %137 = math.exp %136 : vector<8x128xf32>
    %cst_43 = arith.constant 1.000000e+00 : f32
    %138 = vector.broadcast %cst_43 : f32 to vector<8x128xf32>
    %139 = arith.addf %138, %137 : vector<8x128xf32>
    %140 = arith.divf %138, %139 : vector<8x128xf32>
    %141 = vector.extract_strided_slice %128 {offsets = [0, 256], sizes = [8, 128], strides = [1, 1]} : vector<8x512xf32> to vector<8x128xf32>
    %142 = math.tanh %141 : vector<8x128xf32>
    %143 = vector.extract_strided_slice %128 {offsets = [0, 384], sizes = [8, 128], strides = [1, 1]} : vector<8x512xf32> to vector<8x128xf32>
    %144 = arith.negf %143 : vector<8x128xf32>
    %145 = math.exp %144 : vector<8x128xf32>
    %cst_44 = arith.constant 1.000000e+00 : f32
    %146 = vector.broadcast %cst_44 : f32 to vector<8x128xf32>
    %147 = arith.addf %146, %145 : vector<8x128xf32>
    %148 = arith.divf %146, %147 : vector<8x128xf32>
    %149 = arith.mulf %140, %115 : vector<8x128xf32>
    %150 = arith.mulf %134, %142 : vector<8x128xf32>
    %151 = arith.addf %149, %150 : vector<8x128xf32>
    %152 = math.tanh %151 : vector<8x128xf32>
    %153 = arith.mulf %148, %152 : vector<8x128xf32>
    %c0_45 = arith.constant 0 : index
    %154 = arith.index_cast %123 : i32 to index
    %c0_46 = arith.constant 0 : index
    %155 = vector.load %arg6[%c0_45, %154, %c0_46] : memref<1x64x128xf32, #tpu.memory_space<vmem>>, vector<1x8x128xf32>
    %156 = vector.shape_cast %155 : vector<1x8x128xf32> to vector<8x128xf32>
    %157 = vector.shape_cast %153 : vector<8x128xf32> to vector<1x8x128xf32>
    tpu.vector_store %arg6[%c0_45, %154, %c0_46], %157 {strides = array<i32>} : memref<1x64x128xf32, #tpu.memory_space<vmem>>, vector<1x8x128xf32>,
    %c4_i32 = arith.constant 4 : i32
    %c8_i32_47 = arith.constant 8 : i32
    %158 = arith.muli %c4_i32, %c8_i32_47 : i32
    %159 = tpu.assume_multiple %158, 8 : i32
    %160 = arith.index_cast %159 : i32 to index
    %c0_48 = arith.constant 0 : index
    %161 = vector.load %arg9[%160, %c0_48] : memref<64x512xf32, #tpu.memory_space<vmem>>, vector<8x512xf32>
    %162 = arith.truncf %153 : vector<8x128xf32> to vector<8x128xbf16>
    %cst_49 = arith.constant dense<0.000000e+00> : vector<8x512xf32>
    %163 = tpu.matmul %162, %3, %cst_49 {dimension_numbers = #tpu.dot_dimension_numbers<[1], [0], [0], [1], [0, 0, 1, 1], [], []>} : vector<8x128xbf16>, vector<128x512xbf16>, vector<8x512xf32> -> vector<8x512xf32>
    %164 = arith.addf %161, %163 : vector<8x512xf32>
    %165 = vector.extract_strided_slice %164 {offsets = [0, 0], sizes = [8, 128], strides = [1, 1]} : vector<8x512xf32> to vector<8x128xf32>
    %166 = arith.negf %165 : vector<8x128xf32>
    %167 = math.exp %166 : vector<8x128xf32>
    %cst_50 = arith.constant 1.000000e+00 : f32
    %168 = vector.broadcast %cst_50 : f32 to vector<8x128xf32>
    %169 = arith.addf %168, %167 : vector<8x128xf32>
    %170 = arith.divf %168, %169 : vector<8x128xf32>
    %171 = vector.extract_strided_slice %164 {offsets = [0, 128], sizes = [8, 128], strides = [1, 1]} : vector<8x512xf32> to vector<8x128xf32>
    %172 = arith.negf %171 : vector<8x128xf32>
    %173 = math.exp %172 : vector<8x128xf32>
    %cst_51 = arith.constant 1.000000e+00 : f32
    %174 = vector.broadcast %cst_51 : f32 to vector<8x128xf32>
    %175 = arith.addf %174, %173 : vector<8x128xf32>
    %176 = arith.divf %174, %175 : vector<8x128xf32>
    %177 = vector.extract_strided_slice %164 {offsets = [0, 256], sizes = [8, 128], strides = [1, 1]} : vector<8x512xf32> to vector<8x128xf32>
    %178 = math.tanh %177 : vector<8x128xf32>
    %179 = vector.extract_strided_slice %164 {offsets = [0, 384], sizes = [8, 128], strides = [1, 1]} : vector<8x512xf32> to vector<8x128xf32>
    %180 = arith.negf %179 : vector<8x128xf32>
    %181 = math.exp %180 : vector<8x128xf32>
    %cst_52 = arith.constant 1.000000e+00 : f32
    %182 = vector.broadcast %cst_52 : f32 to vector<8x128xf32>
    %183 = arith.addf %182, %181 : vector<8x128xf32>
    %184 = arith.divf %182, %183 : vector<8x128xf32>
    %185 = arith.mulf %176, %151 : vector<8x128xf32>
    %186 = arith.mulf %170, %178 : vector<8x128xf32>
    %187 = arith.addf %185, %186 : vector<8x128xf32>
    %188 = math.tanh %187 : vector<8x128xf32>
    %189 = arith.mulf %184, %188 : vector<8x128xf32>
    %c0_53 = arith.constant 0 : index
    %190 = arith.index_cast %159 : i32 to index
    %c0_54 = arith.constant 0 : index
    %191 = vector.load %arg6[%c0_53, %190, %c0_54] : memref<1x64x128xf32, #tpu.memory_space<vmem>>, vector<1x8x128xf32>
    %192 = vector.shape_cast %191 : vector<1x8x128xf32> to vector<8x128xf32>
    %193 = vector.shape_cast %189 : vector<8x128xf32> to vector<1x8x128xf32>
    tpu.vector_store %arg6[%c0_53, %190, %c0_54], %193 {strides = array<i32>} : memref<1x64x128xf32, #tpu.memory_space<vmem>>, vector<1x8x128xf32>,
    %c5_i32 = arith.constant 5 : i32
    %c8_i32_55 = arith.constant 8 : i32
    %194 = arith.muli %c5_i32, %c8_i32_55 : i32
    %195 = tpu.assume_multiple %194, 8 : i32
    %196 = arith.index_cast %195 : i32 to index
    %c0_56 = arith.constant 0 : index
    %197 = vector.load %arg9[%196, %c0_56] : memref<64x512xf32, #tpu.memory_space<vmem>>, vector<8x512xf32>
    %198 = arith.truncf %189 : vector<8x128xf32> to vector<8x128xbf16>
    %cst_57 = arith.constant dense<0.000000e+00> : vector<8x512xf32>
    %199 = tpu.matmul %198, %3, %cst_57 {dimension_numbers = #tpu.dot_dimension_numbers<[1], [0], [0], [1], [0, 0, 1, 1], [], []>} : vector<8x128xbf16>, vector<128x512xbf16>, vector<8x512xf32> -> vector<8x512xf32>
    %200 = arith.addf %197, %199 : vector<8x512xf32>
    %201 = vector.extract_strided_slice %200 {offsets = [0, 0], sizes = [8, 128], strides = [1, 1]} : vector<8x512xf32> to vector<8x128xf32>
    %202 = arith.negf %201 : vector<8x128xf32>
    %203 = math.exp %202 : vector<8x128xf32>
    %cst_58 = arith.constant 1.000000e+00 : f32
    %204 = vector.broadcast %cst_58 : f32 to vector<8x128xf32>
    %205 = arith.addf %204, %203 : vector<8x128xf32>
    %206 = arith.divf %204, %205 : vector<8x128xf32>
    %207 = vector.extract_strided_slice %200 {offsets = [0, 128], sizes = [8, 128], strides = [1, 1]} : vector<8x512xf32> to vector<8x128xf32>
    %208 = arith.negf %207 : vector<8x128xf32>
    %209 = math.exp %208 : vector<8x128xf32>
    %cst_59 = arith.constant 1.000000e+00 : f32
    %210 = vector.broadcast %cst_59 : f32 to vector<8x128xf32>
    %211 = arith.addf %210, %209 : vector<8x128xf32>
    %212 = arith.divf %210, %211 : vector<8x128xf32>
    %213 = vector.extract_strided_slice %200 {offsets = [0, 256], sizes = [8, 128], strides = [1, 1]} : vector<8x512xf32> to vector<8x128xf32>
    %214 = math.tanh %213 : vector<8x128xf32>
    %215 = vector.extract_strided_slice %200 {offsets = [0, 384], sizes = [8, 128], strides = [1, 1]} : vector<8x512xf32> to vector<8x128xf32>
    %216 = arith.negf %215 : vector<8x128xf32>
    %217 = math.exp %216 : vector<8x128xf32>
    %cst_60 = arith.constant 1.000000e+00 : f32
    %218 = vector.broadcast %cst_60 : f32 to vector<8x128xf32>
    %219 = arith.addf %218, %217 : vector<8x128xf32>
    %220 = arith.divf %218, %219 : vector<8x128xf32>
    %221 = arith.mulf %212, %187 : vector<8x128xf32>
    %222 = arith.mulf %206, %214 : vector<8x128xf32>
    %223 = arith.addf %221, %222 : vector<8x128xf32>
    %224 = math.tanh %223 : vector<8x128xf32>
    %225 = arith.mulf %220, %224 : vector<8x128xf32>
    %c0_61 = arith.constant 0 : index
    %226 = arith.index_cast %195 : i32 to index
    %c0_62 = arith.constant 0 : index
    %227 = vector.load %arg6[%c0_61, %226, %c0_62] : memref<1x64x128xf32, #tpu.memory_space<vmem>>, vector<1x8x128xf32>
    %228 = vector.shape_cast %227 : vector<1x8x128xf32> to vector<8x128xf32>
    %229 = vector.shape_cast %225 : vector<8x128xf32> to vector<1x8x128xf32>
    tpu.vector_store %arg6[%c0_61, %226, %c0_62], %229 {strides = array<i32>} : memref<1x64x128xf32, #tpu.memory_space<vmem>>, vector<1x8x128xf32>,
    %c6_i32 = arith.constant 6 : i32
    %c8_i32_63 = arith.constant 8 : i32
    %230 = arith.muli %c6_i32, %c8_i32_63 : i32
    %231 = tpu.assume_multiple %230, 8 : i32
    %232 = arith.index_cast %231 : i32 to index
    %c0_64 = arith.constant 0 : index
    %233 = vector.load %arg9[%232, %c0_64] : memref<64x512xf32, #tpu.memory_space<vmem>>, vector<8x512xf32>
    %234 = arith.truncf %225 : vector<8x128xf32> to vector<8x128xbf16>
    %cst_65 = arith.constant dense<0.000000e+00> : vector<8x512xf32>
    %235 = tpu.matmul %234, %3, %cst_65 {dimension_numbers = #tpu.dot_dimension_numbers<[1], [0], [0], [1], [0, 0, 1, 1], [], []>} : vector<8x128xbf16>, vector<128x512xbf16>, vector<8x512xf32> -> vector<8x512xf32>
    %236 = arith.addf %233, %235 : vector<8x512xf32>
    %237 = vector.extract_strided_slice %236 {offsets = [0, 0], sizes = [8, 128], strides = [1, 1]} : vector<8x512xf32> to vector<8x128xf32>
    %238 = arith.negf %237 : vector<8x128xf32>
    %239 = math.exp %238 : vector<8x128xf32>
    %cst_66 = arith.constant 1.000000e+00 : f32
    %240 = vector.broadcast %cst_66 : f32 to vector<8x128xf32>
    %241 = arith.addf %240, %239 : vector<8x128xf32>
    %242 = arith.divf %240, %241 : vector<8x128xf32>
    %243 = vector.extract_strided_slice %236 {offsets = [0, 128], sizes = [8, 128], strides = [1, 1]} : vector<8x512xf32> to vector<8x128xf32>
    %244 = arith.negf %243 : vector<8x128xf32>
    %245 = math.exp %244 : vector<8x128xf32>
    %cst_67 = arith.constant 1.000000e+00 : f32
    %246 = vector.broadcast %cst_67 : f32 to vector<8x128xf32>
    %247 = arith.addf %246, %245 : vector<8x128xf32>
    %248 = arith.divf %246, %247 : vector<8x128xf32>
    %249 = vector.extract_strided_slice %236 {offsets = [0, 256], sizes = [8, 128], strides = [1, 1]} : vector<8x512xf32> to vector<8x128xf32>
    %250 = math.tanh %249 : vector<8x128xf32>
    %251 = vector.extract_strided_slice %236 {offsets = [0, 384], sizes = [8, 128], strides = [1, 1]} : vector<8x512xf32> to vector<8x128xf32>
    %252 = arith.negf %251 : vector<8x128xf32>
    %253 = math.exp %252 : vector<8x128xf32>
    %cst_68 = arith.constant 1.000000e+00 : f32
    %254 = vector.broadcast %cst_68 : f32 to vector<8x128xf32>
    %255 = arith.addf %254, %253 : vector<8x128xf32>
    %256 = arith.divf %254, %255 : vector<8x128xf32>
    %257 = arith.mulf %248, %223 : vector<8x128xf32>
    %258 = arith.mulf %242, %250 : vector<8x128xf32>
    %259 = arith.addf %257, %258 : vector<8x128xf32>
    %260 = math.tanh %259 : vector<8x128xf32>
    %261 = arith.mulf %256, %260 : vector<8x128xf32>
    %c0_69 = arith.constant 0 : index
    %262 = arith.index_cast %231 : i32 to index
    %c0_70 = arith.constant 0 : index
    %263 = vector.load %arg6[%c0_69, %262, %c0_70] : memref<1x64x128xf32, #tpu.memory_space<vmem>>, vector<1x8x128xf32>
    %264 = vector.shape_cast %263 : vector<1x8x128xf32> to vector<8x128xf32>
    %265 = vector.shape_cast %261 : vector<8x128xf32> to vector<1x8x128xf32>
    tpu.vector_store %arg6[%c0_69, %262, %c0_70], %265 {strides = array<i32>} : memref<1x64x128xf32, #tpu.memory_space<vmem>>, vector<1x8x128xf32>,
    %c7_i32 = arith.constant 7 : i32
    %c8_i32_71 = arith.constant 8 : i32
    %266 = arith.muli %c7_i32, %c8_i32_71 : i32
    %267 = tpu.assume_multiple %266, 8 : i32
    %268 = arith.index_cast %267 : i32 to index
    %c0_72 = arith.constant 0 : index
    %269 = vector.load %arg9[%268, %c0_72] : memref<64x512xf32, #tpu.memory_space<vmem>>, vector<8x512xf32>
    %270 = arith.truncf %261 : vector<8x128xf32> to vector<8x128xbf16>
    %cst_73 = arith.constant dense<0.000000e+00> : vector<8x512xf32>
    %271 = tpu.matmul %270, %3, %cst_73 {dimension_numbers = #tpu.dot_dimension_numbers<[1], [0], [0], [1], [0, 0, 1, 1], [], []>} : vector<8x128xbf16>, vector<128x512xbf16>, vector<8x512xf32> -> vector<8x512xf32>
    %272 = arith.addf %269, %271 : vector<8x512xf32>
    %273 = vector.extract_strided_slice %272 {offsets = [0, 0], sizes = [8, 128], strides = [1, 1]} : vector<8x512xf32> to vector<8x128xf32>
    %274 = arith.negf %273 : vector<8x128xf32>
    %275 = math.exp %274 : vector<8x128xf32>
    %cst_74 = arith.constant 1.000000e+00 : f32
    %276 = vector.broadcast %cst_74 : f32 to vector<8x128xf32>
    %277 = arith.addf %276, %275 : vector<8x128xf32>
    %278 = arith.divf %276, %277 : vector<8x128xf32>
    %279 = vector.extract_strided_slice %272 {offsets = [0, 128], sizes = [8, 128], strides = [1, 1]} : vector<8x512xf32> to vector<8x128xf32>
    %280 = arith.negf %279 : vector<8x128xf32>
    %281 = math.exp %280 : vector<8x128xf32>
    %cst_75 = arith.constant 1.000000e+00 : f32
    %282 = vector.broadcast %cst_75 : f32 to vector<8x128xf32>
    %283 = arith.addf %282, %281 : vector<8x128xf32>
    %284 = arith.divf %282, %283 : vector<8x128xf32>
    %285 = vector.extract_strided_slice %272 {offsets = [0, 256], sizes = [8, 128], strides = [1, 1]} : vector<8x512xf32> to vector<8x128xf32>
    %286 = math.tanh %285 : vector<8x128xf32>
    %287 = vector.extract_strided_slice %272 {offsets = [0, 384], sizes = [8, 128], strides = [1, 1]} : vector<8x512xf32> to vector<8x128xf32>
    %288 = arith.negf %287 : vector<8x128xf32>
    %289 = math.exp %288 : vector<8x128xf32>
    %cst_76 = arith.constant 1.000000e+00 : f32
    %290 = vector.broadcast %cst_76 : f32 to vector<8x128xf32>
    %291 = arith.addf %290, %289 : vector<8x128xf32>
    %292 = arith.divf %290, %291 : vector<8x128xf32>
    %293 = arith.mulf %284, %259 : vector<8x128xf32>
    %294 = arith.mulf %278, %286 : vector<8x128xf32>
    %295 = arith.addf %293, %294 : vector<8x128xf32>
    %296 = math.tanh %295 : vector<8x128xf32>
    %297 = arith.mulf %292, %296 : vector<8x128xf32>
    %c0_77 = arith.constant 0 : index
    %298 = arith.index_cast %267 : i32 to index
    %c0_78 = arith.constant 0 : index
    %299 = vector.load %arg6[%c0_77, %298, %c0_78] : memref<1x64x128xf32, #tpu.memory_space<vmem>>, vector<1x8x128xf32>
    %300 = vector.shape_cast %299 : vector<1x8x128xf32> to vector<8x128xf32>
    %301 = vector.shape_cast %297 : vector<8x128xf32> to vector<1x8x128xf32>
    tpu.vector_store %arg6[%c0_77, %298, %c0_78], %301 {strides = array<i32>} : memref<1x64x128xf32, #tpu.memory_space<vmem>>, vector<1x8x128xf32>,
    %c8_i32_79 = arith.constant 8 : i32
    %c0_80 = arith.constant 0 : index
    %c0_81 = arith.constant 0 : index
    %302 = vector.load %arg7[%c0_80, %c0_81] : memref<8x128xf32, #tpu.memory_space<vmem>>, vector<8x128xf32>
    tpu.vector_store %arg7[%c0_80, %c0_81], %297 {strides = array<i32>} : memref<8x128xf32, #tpu.memory_space<vmem>>, vector<8x128xf32>,
    %c0_82 = arith.constant 0 : index
    %c0_83 = arith.constant 0 : index
    %303 = vector.load %arg8[%c0_82, %c0_83] : memref<8x128xf32, #tpu.memory_space<vmem>>, vector<8x128xf32>
    tpu.vector_store %arg8[%c0_82, %c0_83], %295 {strides = array<i32>} : memref<8x128xf32, #tpu.memory_space<vmem>>, vector<8x128xf32>,
    return
  }
  func.func @transform_0(%arg0: i32, %arg1: i32) -> (i32, i32, i32) {
    %c0_i32 = arith.constant 0 : i32
    %c0_i32_0 = arith.constant 0 : i32
    return %arg0, %arg1, %c0_i32 : i32, i32, i32
  }
  func.func @transform_1(%arg0: i32, %arg1: i32) -> (i32, i32) {
    %c0_i32 = arith.constant 0 : i32
    %c0_i32_0 = arith.constant 0 : i32
    %c0_i32_1 = arith.constant 0 : i32
    return %c0_i32, %c0_i32_0 : i32, i32
  }
  func.func @transform_2(%arg0: i32, %arg1: i32) -> (i32, i32) {
    %c0_i32 = arith.constant 0 : i32
    %c0_i32_0 = arith.constant 0 : i32
    %c0_i32_1 = arith.constant 0 : i32
    return %c0_i32, %c0_i32_0 : i32, i32
  }
  func.func @transform_3(%arg0: i32, %arg1: i32) -> (i32, i32) {
    %c0_i32 = arith.constant 0 : i32
    %c0_i32_0 = arith.constant 0 : i32
    %c0_i32_1 = arith.constant 0 : i32
    return %c0_i32, %c0_i32_0 : i32, i32
  }
  func.func @transform_4(%arg0: i32, %arg1: i32) -> (i32, i32, i32) {
    %c0_i32 = arith.constant 0 : i32
    %c0_i32_0 = arith.constant 0 : i32
    return %arg0, %arg1, %c0_i32 : i32, i32, i32
  }
  func.func @transform_5(%arg0: i32, %arg1: i32) -> (i32, i32) {
    %c0_i32 = arith.constant 0 : i32
    %c0_i32_0 = arith.constant 0 : i32
    return %arg0, %c0_i32 : i32, i32
  }
  func.func @transform_6(%arg0: i32, %arg1: i32) -> (i32, i32) {
    %c0_i32 = arith.constant 0 : i32
    %c0_i32_0 = arith.constant 0 : i32
    return %arg0, %c0_i32 : i32, i32
  }
}

</mosaic_0001>

<llo_original>
// kernel: tpu_custom_call.1
$region0: #{tpu_custom_call.1}
  #allocation0 [shape = 'u32[]', space=smem, size = 0x4, offset = 0x4, fixed_abs, tag = 'smem constant byte address 0x4 - core index']
  #allocation1 [shape = 'u32[144,128]{1,0:T(1,128)}', space=vmem, size = 0x12000, scoped, tag = 'internal scratch']
  #allocation2 [shape = 'f32[64,512]{1,0:T(8,128)}', space=vmem, size = 0x20000, scoped, tag = 'scratch operand']
  %s0 = inlined_call_operand.vmem [shape: bf16[1,64,16], index: 0, kind: input, shape index: {}]
  %s1 = inlined_call_operand.vmem [shape: bf16[16,512], index: 1, kind: input, shape index: {}]
  %s2 = inlined_call_operand.hbm [shape: bf16[128,512], index: 2, kind: input, shape index: {}]
  %s3 = inlined_call_operand.vmem [shape: f32[1,512], index: 3, kind: input, shape index: {}]
  %s4 = inlined_call_operand.hbm [shape: f32[1,64,128], index: 4, kind: output, shape index: {0}]
  %s5 = inlined_call_operand.hbm [shape: f32[8,128], index: 5, kind: output, shape index: {1}]
  %s6 = inlined_call_operand.hbm [shape: f32[8,128], index: 6, kind: output, shape index: {2}]
  %7 = xla_tuple %s4, %s5, %s6
  %s8 = sld [smem:[#allocation0]]
  $region50: #{tpu_custom_call.1} parent=0
    _
  %s10 = ssub.s32 1, %s8
  %s11 = scalar_select 0, %s10, %s8
  $region1: #{tpu_custom_call.1} parent=0
    #allocation3 [shape = 'u8[131072]{0}', space=vmem, size = 0x20000, scoped, tag = 'input window, operand 2, single buffered']
    #allocation4 [shape = 's32[1]{0}', space=sflag, size = 0x4, scoped, tag = 'scoped memory for tpu_custom_call.1']
    #allocation5 [shape = 's32[1]{0}', space=sflag, size = 0x4, scoped, tag = 'scoped memory for tpu_custom_call.1']
    #allocation6 [shape = 'u8[32768]{0}', space=vmem, size = 0x8000, scoped, tag = 'output window, operand 0, single buffered']
    #allocation7 [shape = 'u8[4096]{0}', space=vmem, size = 0x1000, scoped, tag = 'output window, operand 1, single buffered']
    #allocation8 [shape = 's32[1]{0}', space=sflag, size = 0x4, scoped, tag = 'scoped memory for tpu_custom_call.1']
    #allocation9 [shape = 'u8[4096]{0}', space=vmem, size = 0x1000, scoped, tag = 'output window, operand 2, single buffered']
    %12 = vsyncpa [#allocation4], 0
    %13 = vsyncpa [#allocation5], 0
    %14 = vsyncpa [#allocation8], 0
    // Predicated region
    $region2: #{tpu_custom_call.1} parent=1 // pred_check
      _
    $region3: #{tpu_custom_call.1} parent=1 // pred_check_branch
      %16 = sbr.rel (0) target = $region5
    $region4: #{tpu_custom_call.1} parent=1 // pred_region
      _
    $region5: #{tpu_custom_call.1} parent=1 // pred_fallthru
      _
    // Predicated region
    $region6: #{tpu_custom_call.1} parent=1 // pred_check
      _
    $region7: #{tpu_custom_call.1} parent=1 // pred_check_branch
      %18 = sbr.rel (0) target = $region9
    $region8: #{tpu_custom_call.1} parent=1 // pred_region
      _
    $region9: #{tpu_custom_call.1} parent=1 // pred_fallthru
      _
    // Predicated region
    $region10: #{tpu_custom_call.1} parent=1 // pred_check
      _
    $region11: #{tpu_custom_call.1} parent=1 // pred_check_branch
      %20 = sbr.rel (0) target = $region13
    $region12: #{tpu_custom_call.1} parent=1 // pred_region
      %s22 = ssub.s32 4096, 4096
      %23 = vsyncadd [#allocation4], %s22
      %s24 = sshll.u32 [#allocation3], 4
      %s25 = int_to_ptr.vmem [resolvable:$true] %s24
      %30 = dma.hbm_to_vmem [thread:$0]  %s2, 4096, %s25, [#allocation4], 256, 256, 16
    $region13: #{tpu_custom_call.1} parent=1 // pred_fallthru
      _
    // Predicated region
    $region14: #{tpu_custom_call.1} parent=1 // pred_check
      _
    $region15: #{tpu_custom_call.1} parent=1 // pred_check_branch
      %32 = sbr.rel (0) target = $region17
    $region16: #{tpu_custom_call.1} parent=1 // pred_region
      _
    $region17: #{tpu_custom_call.1} parent=1 // pred_fallthru
      _
    // Predicated region
    $region18: #{tpu_custom_call.1} parent=1 // pred_check
      _
    $region19: #{tpu_custom_call.1} parent=1 // pred_check_branch
      %34 = sbr.rel (0) target = $region21
    $region20: #{tpu_custom_call.1} parent=1 // pred_region
      %35 = dma.done [#allocation4], 4096
    $region21: #{tpu_custom_call.1} parent=1 // pred_fallthru
      _
    %p37 = scmp.eq.s32.totalorder 0, 0
    // Predicated region
    $region22: #{tpu_custom_call.1} parent=1 // pred_check
      %p38 = pneg %p37
    $region23: #{tpu_custom_call.1} parent=1 // pred_check_branch
      %40 = sbr.rel (%p38) target = $region25
    $region24: #{tpu_custom_call.1} parent=1 // pred_region
      %41 = vst [vmem:[#allocation7] sm:$0xff] 0.0
      %42 = vst [vmem:[#allocation9] sm:$0xff] 0.0
    $region25: #{tpu_custom_call.1} parent=1 // pred_fallthru
      _
    %v43 = vld [vmem:[#allocation3] sm:$0xff]
    %v44 = vld [vmem:[#allocation3 + $0x8] sm:$0xff]
    %v45 = vld [vmem:[#allocation3 + $0x10] sm:$0xff]
    %v46 = vld [vmem:[#allocation3 + $0x18] sm:$0xff]
    %v47 = vld [vmem:[#allocation3 + $0x20] sm:$0xff]
    %v48 = vld [vmem:[#allocation3 + $0x28] sm:$0xff]
    %v49 = vld [vmem:[#allocation3 + $0x30] sm:$0xff]
    %v50 = vld [vmem:[#allocation3 + $0x38] sm:$0xff]
    %v51 = vld [vmem:[#allocation3 + $0x40] sm:$0xff]
    %v52 = vld [vmem:[#allocation3 + $0x48] sm:$0xff]
    %v53 = vld [vmem:[#allocation3 + $0x50] sm:$0xff]
    %v54 = vld [vmem:[#allocation3 + $0x58] sm:$0xff]
    %v55 = vld [vmem:[#allocation3 + $0x60] sm:$0xff]
    %v56 = vld [vmem:[#allocation3 + $0x68] sm:$0xff]
    %v57 = vld [vmem:[#allocation3 + $0x70] sm:$0xff]
    %v58 = vld [vmem:[#allocation3 + $0x78] sm:$0xff]
    %v59 = vld [vmem:[#allocation3 + $0x80] sm:$0xff]
    %v60 = vld [vmem:[#allocation3 + $0x88] sm:$0xff]
    %v61 = vld [vmem:[#allocation3 + $0x90] sm:$0xff]
    %v62 = vld [vmem:[#allocation3 + $0x98] sm:$0xff]
    %v63 = vld [vmem:[#allocation3 + $0xa0] sm:$0xff]
    %v64 = vld [vmem:[#allocation3 + $0xa8] sm:$0xff]
    %v65 = vld [vmem:[#allocation3 + $0xb0] sm:$0xff]
    %v66 = vld [vmem:[#allocation3 + $0xb8] sm:$0xff]
    %v67 = vld [vmem:[#allocation3 + $0xc0] sm:$0xff]
    %v68 = vld [vmem:[#allocation3 + $0xc8] sm:$0xff]
    %v69 = vld [vmem:[#allocation3 + $0xd0] sm:$0xff]
    %v70 = vld [vmem:[#allocation3 + $0xd8] sm:$0xff]
    %v71 = vld [vmem:[#allocation3 + $0xe0] sm:$0xff]
    %v72 = vld [vmem:[#allocation3 + $0xe8] sm:$0xff]
    %v73 = vld [vmem:[#allocation3 + $0xf0] sm:$0xff]
    %v74 = vld [vmem:[#allocation3 + $0xf8] sm:$0xff]
    %v75 = vld [vmem:[%s0] sm:$0xf]
    %v76 = vld [vmem:[%s0 + $0x4] sm:$0xf]
    %v77 = vld [vmem:[%s0 + $0x8] sm:$0xf]
    %v78 = vld [vmem:[%s0 + $0xc] sm:$0xf]
    %v79 = vld [vmem:[%s0 + $0x10] sm:$0xf]
    %v80 = vld [vmem:[%s0 + $0x14] sm:$0xf]
    %v81 = vld [vmem:[%s0 + $0x18] sm:$0xf]
    %v82 = vld [vmem:[%s0 + $0x1c] sm:$0xf]
    %v83 = vld [vmem:[%s1] sm:$0xff]
    %v84 = vld [vmem:[%s1 + $0x8] sm:$0xff]
    %v85 = vld [vmem:[%s1 + $0x10] sm:$0xff]
    %v86 = vld [vmem:[%s1 + $0x18] sm:$0xff]
    %v87 = vld [vmem:[%s3] sm:$0xf]
    %v89 = vlaneseq
    %v90 = vshrl.u32 %v89, 7
    %v91 = vsub.s32 0, %v90
    %v92 = vrot.slane %v87, %v91
    %v93 = vlaneseq
    %v94 = vshrl.u32 %v93, 7
    %v95 = vsub.s32 1, %v94
    %v96 = vrot.slane %v87, %v95
    %v97 = vlaneseq
    %v98 = vshrl.u32 %v97, 7
    %v99 = vsub.s32 2, %v98
    %v100 = vrot.slane %v87, %v99
    %v101 = vlaneseq
    %v102 = vshrl.u32 %v101, 7
    %v103 = vsub.s32 3, %v102
    %v104 = vrot.slane %v87, %v103
    %v117 = vunpack.c.l.b16 %v75
    %v118 = vunpack.c.l.b16 %v76
    %v119 = vunpack.c.l.b16 %v77
    %v120 = vunpack.c.l.b16 %v78
    %v121 = vunpack.c.l.b16 %v79
    %v122 = vunpack.c.l.b16 %v80
    %v123 = vunpack.c.l.b16 %v81
    %v124 = vunpack.c.l.b16 %v82
    %v125 = vpack.c.b16 %v118, %v117
    %v126 = vpack.c.b16 %v120, %v119
    %v127 = vpack.c.b16 %v122, %v121
    %v128 = vpack.c.b16 %v124, %v123
    %v133 = vunpack.c.l.b16 %v83
    %v134 = vunpack.c.h.b16 %v83
    %v135 = vunpack.c.l.b16 %v84
    %v136 = vunpack.c.h.b16 %v84
    %v137 = vunpack.c.l.b16 %v85
    %v138 = vunpack.c.h.b16 %v85
    %v139 = vunpack.c.l.b16 %v86
    %v140 = vunpack.c.h.b16 %v86
    %v141 = vpack.c.b16 %v137, %v133
    %v142 = vpack.c.b16 %v138, %v134
    %v143 = vpack.c.b16 %v139, %v135
    %v144 = vpack.c.b16 %v140, %v136
    %vm149 = vcmask 130048
    %v151 = vsel %vm149, %v125, 0
    %v154 = vsel %vm149, %v126, 0
    %v157 = vsel %vm149, %v127, 0
    %v160 = vsel %vm149, %v128, 0
    %162 = vmatprep.subr.bf16.mxu0 %v142
    %163 = vmatpush1.bf16.msra.mxu0 %v141
    %164 = vmatprep.subr.bf16.mxu0 0
    %165 = vmatpush1.bf16.msra.mxu0 0
    %166 = vmatprep.subr.bf16.mxu0 0
    %167 = vmatpush1.bf16.msra.mxu0 0
    %168 = vmatprep.subr.bf16.mxu0 0
    %169 = vmatpush1.bf16.msra.mxu0 0
    %170 = vmatprep.subr.bf16.mxu0 0
    %171 = vmatpush1.bf16.msra.mxu0 0
    %172 = vmatprep.subr.bf16.mxu0 0
    %173 = vmatpush1.bf16.msra.mxu0 0
    %174 = vmatprep.subr.bf16.mxu0 0
    %175 = vmatpush1.bf16.msra.mxu0 0
    %176 = vmatprep.subr.bf16.mxu0 0
    %177 = vmatpush1.bf16.msra.mxu0 0
    %178 = vmatprep.subr.bf16.mxu0 0
    %179 = vmatpush1.bf16.msra.mxu0 0
    %180 = vmatprep.subr.bf16.mxu0 0
    %181 = vmatpush1.bf16.msra.mxu0 0
    %182 = vmatprep.subr.bf16.mxu0 0
    %183 = vmatpush1.bf16.msra.mxu0 0
    %184 = vmatprep.subr.bf16.mxu0 0
    %185 = vmatpush1.bf16.msra.mxu0 0
    %186 = vmatprep.subr.bf16.mxu0 0
    %187 = vmatpush1.bf16.msra.mxu0 0
    %188 = vmatprep.subr.bf16.mxu0 0
    %189 = vmatpush1.bf16.msra.mxu0 0
    %190 = vmatprep.subr.bf16.mxu0 0
    %191 = vmatpush1.bf16.msra.mxu0 0
    %192 = vmatprep.subr.bf16.mxu0 0
    %193 = vmatpush1.bf16.msra.mxu0 0
    %194 = vmatprep.mubr.bf16.mxu0 0
    %195 = vmatmul.mubr.bf16.gmra.mrb[0].mxu0 %v151
    %v196 = vpop.f32.mrb[0].mxu0
    %v197 = vadd.f32 %v92, %v196
    %v198 = vpop.f32.mrb[0].mxu0
    %v199 = vadd.f32 %v96, %v198
    %v200 = vpop.f32.mrb[0].mxu0
    %v201 = vadd.f32 %v92, %v200
    %v202 = vpop.f32.mrb[0].mxu0
    %v203 = vadd.f32 %v96, %v202
    %204 = vmatprep.mubr.bf16.mxu0 0
    %205 = vmatmul.mubr.bf16.gmra.mrb[0].mxu0 %v154
    %v206 = vpop.f32.mrb[0].mxu0
    %v207 = vadd.f32 %v92, %v206
    %v208 = vpop.f32.mrb[0].mxu0
    %v209 = vadd.f32 %v96, %v208
    %v210 = vpop.f32.mrb[0].mxu0
    %v211 = vadd.f32 %v92, %v210
    %v212 = vpop.f32.mrb[0].mxu0
    %v213 = vadd.f32 %v96, %v212
    %214 = vmatprep.mubr.bf16.mxu0 0
    %215 = vmatmul.mubr.bf16.gmra.mrb[0].mxu0 %v157
    %v216 = vpop.f32.mrb[0].mxu0
    %v217 = vadd.f32 %v92, %v216
    %v218 = vpop.f32.mrb[0].mxu0
    %v219 = vadd.f32 %v96, %v218
    %v220 = vpop.f32.mrb[0].mxu0
    %v221 = vadd.f32 %v92, %v220
    %v222 = vpop.f32.mrb[0].mxu0
    %v223 = vadd.f32 %v96, %v222
    %224 = vmatprep.mubr.bf16.mxu0 0
    %225 = vmatmul.mubr.bf16.gmra.mrb[0].mxu0 %v160
    %v226 = vpop.f32.mrb[0].mxu0
    %v227 = vadd.f32 %v92, %v226
    %v228 = vpop.f32.mrb[0].mxu0
    %v229 = vadd.f32 %v96, %v228
    %v230 = vpop.f32.mrb[0].mxu0
    %v231 = vadd.f32 %v92, %v230
    %v232 = vpop.f32.mrb[0].mxu0
    %v233 = vadd.f32 %v96, %v232
    %234 = vdwg.mxu0
    %235 = vmatprep.subr.bf16.mxu0 %v144
    %236 = vmatpush1.bf16.msra.mxu0 %v143
    %237 = vmatprep.subr.bf16.mxu0 0
    %238 = vmatpush1.bf16.msra.mxu0 0
    %239 = vmatprep.subr.bf16.mxu0 0
    %240 = vmatpush1.bf16.msra.mxu0 0
    %241 = vmatprep.subr.bf16.mxu0 0
    %242 = vmatpush1.bf16.msra.mxu0 0
    %243 = vmatprep.subr.bf16.mxu0 0
    %244 = vmatpush1.bf16.msra.mxu0 0
    %245 = vmatprep.subr.bf16.mxu0 0
    %246 = vmatpush1.bf16.msra.mxu0 0
    %247 = vmatprep.subr.bf16.mxu0 0
    %248 = vmatpush1.bf16.msra.mxu0 0
    %249 = vmatprep.subr.bf16.mxu0 0
    %250 = vmatpush1.bf16.msra.mxu0 0
    %251 = vmatprep.subr.bf16.mxu0 0
    %252 = vmatpush1.bf16.msra.mxu0 0
    %253 = vmatprep.subr.bf16.mxu0 0
    %254 = vmatpush1.bf16.msra.mxu0 0
    %255 = vmatprep.subr.bf16.mxu0 0
    %256 = vmatpush1.bf16.msra.mxu0 0
    %257 = vmatprep.subr.bf16.mxu0 0
    %258 = vmatpush1.bf16.msra.mxu0 0
    %259 = vmatprep.subr.bf16.mxu0 0
    %260 = vmatpush1.bf16.msra.mxu0 0
    %261 = vmatprep.subr.bf16.mxu0 0
    %262 = vmatpush1.bf16.msra.mxu0 0
    %263 = vmatprep.subr.bf16.mxu0 0
    %264 = vmatpush1.bf16.msra.mxu0 0
    %265 = vmatprep.subr.bf16.mxu0 0
    %266 = vmatpush1.bf16.msra.mxu0 0
    %267 = vmatprep.mubr.bf16.mxu0 0
    %268 = vmatmul.mubr.bf16.gmra.mrb[0].mxu0 %v151
    %v269 = vpop.f32.mrb[0].mxu0
    %v270 = vadd.f32 %v100, %v269
    %v271 = vpop.f32.mrb[0].mxu0
    %v272 = vadd.f32 %v104, %v271
    %v273 = vpop.f32.mrb[0].mxu0
    %v274 = vadd.f32 %v100, %v273
    %v275 = vpop.f32.mrb[0].mxu0
    %v276 = vadd.f32 %v104, %v275
    %277 = vmatprep.mubr.bf16.mxu0 0
    %278 = vmatmul.mubr.bf16.gmra.mrb[0].mxu0 %v154
    %v279 = vpop.f32.mrb[0].mxu0
    %v280 = vadd.f32 %v100, %v279
    %v281 = vpop.f32.mrb[0].mxu0
    %v282 = vadd.f32 %v104, %v281
    %v283 = vpop.f32.mrb[0].mxu0
    %v284 = vadd.f32 %v100, %v283
    %v285 = vpop.f32.mrb[0].mxu0
    %v286 = vadd.f32 %v104, %v285
    %287 = vmatprep.mubr.bf16.mxu0 0
    %288 = vmatmul.mubr.bf16.gmra.mrb[0].mxu0 %v157
    %v289 = vpop.f32.mrb[0].mxu0
    %v290 = vadd.f32 %v100, %v289
    %v291 = vpop.f32.mrb[0].mxu0
    %v292 = vadd.f32 %v104, %v291
    %v293 = vpop.f32.mrb[0].mxu0
    %v294 = vadd.f32 %v100, %v293
    %v295 = vpop.f32.mrb[0].mxu0
    %v296 = vadd.f32 %v104, %v295
    %297 = vmatprep.mubr.bf16.mxu0 0
    %298 = vmatmul.mubr.bf16.gmra.mrb[0].mxu0 %v160
    %v299 = vpop.f32.mrb[0].mxu0
    %v300 = vadd.f32 %v100, %v299
    %v301 = vpop.f32.mrb[0].mxu0
    %v302 = vadd.f32 %v104, %v301
    %v303 = vpop.f32.mrb[0].mxu0
    %v304 = vadd.f32 %v100, %v303
    %v305 = vpop.f32.mrb[0].mxu0
    %v306 = vadd.f32 %v104, %v305
    %307 = vdwg.mxu0
    %308 = vst [vmem:[#allocation2] sm:$0xff] %v197
    %309 = vst [vmem:[#allocation2 + $0x8] sm:$0xff] %v199
    %310 = vst [vmem:[#allocation2 + $0x10] sm:$0xff] %v270
    %311 = vst [vmem:[#allocation2 + $0x18] sm:$0xff] %v272
    %312 = vst [vmem:[#allocation2 + $0x20] sm:$0xff] %v201
    %313 = vst [vmem:[#allocation2 + $0x28] sm:$0xff] %v203
    %314 = vst [vmem:[#allocation2 + $0x30] sm:$0xff] %v274
    %315 = vst [vmem:[#allocation2 + $0x38] sm:$0xff] %v276
    %316 = vst [vmem:[#allocation2 + $0x40] sm:$0xff] %v207
    %317 = vst [vmem:[#allocation2 + $0x48] sm:$0xff] %v209
    %318 = vst [vmem:[#allocation2 + $0x50] sm:$0xff] %v280
    %319 = vst [vmem:[#allocation2 + $0x58] sm:$0xff] %v282
    %320 = vst [vmem:[#allocation2 + $0x60] sm:$0xff] %v211
    %321 = vst [vmem:[#allocation2 + $0x68] sm:$0xff] %v213
    %322 = vst [vmem:[#allocation2 + $0x70] sm:$0xff] %v284
    %323 = vst [vmem:[#allocation2 + $0x78] sm:$0xff] %v286
    %324 = vst [vmem:[#allocation2 + $0x80] sm:$0xff] %v217
    %325 = vst [vmem:[#allocation2 + $0x88] sm:$0xff] %v219
    %326 = vst [vmem:[#allocation2 + $0x90] sm:$0xff] %v290
    %327 = vst [vmem:[#allocation2 + $0x98] sm:$0xff] %v292
    %328 = vst [vmem:[#allocation2 + $0xa0] sm:$0xff] %v221
    %329 = vst [vmem:[#allocation2 + $0xa8] sm:$0xff] %v223
    %330 = vst [vmem:[#allocation2 + $0xb0] sm:$0xff] %v294
    %331 = vst [vmem:[#allocation2 + $0xb8] sm:$0xff] %v296
    %332 = vst [vmem:[#allocation2 + $0xc0] sm:$0xff] %v227
    %333 = vst [vmem:[#allocation2 + $0xc8] sm:$0xff] %v229
    %334 = vst [vmem:[#allocation2 + $0xd0] sm:$0xff] %v300
    %335 = vst [vmem:[#allocation2 + $0xd8] sm:$0xff] %v302
    %336 = vst [vmem:[#allocation2 + $0xe0] sm:$0xff] %v231
    %337 = vst [vmem:[#allocation2 + $0xe8] sm:$0xff] %v233
    %338 = vst [vmem:[#allocation2 + $0xf0] sm:$0xff] %v304
    %339 = vst [vmem:[#allocation2 + $0xf8] sm:$0xff] %v306
    %v340 = vld [vmem:[#allocation7] sm:$0xff]
    %v341 = vld [vmem:[#allocation9] sm:$0xff]
    %s342 = smul.u32 0, 4
    %s343 = smul.addr %s342, 8
    %s344 = scalar_lea.vmem [#allocation2], %s343
    %v345 = vld [vmem:[%s344] sm:$0xff]
    %v346 = vld [vmem:[%s344 + $0x8] sm:$0xff]
    %v347 = vld [vmem:[%s344 + $0x10] sm:$0xff]
    %v348 = vld [vmem:[%s344 + $0x18] sm:$0xff]
    %v349 = vpack.c.bf16 %v340, %v340
    %v382 = vunpack.c.l.b16 %v43
    %v383 = vunpack.c.h.b16 %v43
    %v384 = vunpack.c.l.b16 %v44
    %v385 = vunpack.c.h.b16 %v44
    %v386 = vunpack.c.l.b16 %v45
    %v387 = vunpack.c.h.b16 %v45
    %v388 = vunpack.c.l.b16 %v46
    %v389 = vunpack.c.h.b16 %v46
    %v390 = vunpack.c.l.b16 %v47
    %v391 = vunpack.c.h.b16 %v47
    %v392 = vunpack.c.l.b16 %v48
    %v393 = vunpack.c.h.b16 %v48
    %v394 = vunpack.c.l.b16 %v49
    %v395 = vunpack.c.h.b16 %v49
    %v396 = vunpack.c.l.b16 %v50
    %v397 = vunpack.c.h.b16 %v50
    %v398 = vunpack.c.l.b16 %v51
    %v399 = vunpack.c.h.b16 %v51
    %v400 = vunpack.c.l.b16 %v52
    %v401 = vunpack.c.h.b16 %v52
    %v402 = vunpack.c.l.b16 %v53
    %v403 = vunpack.c.h.b16 %v53
    %v404 = vunpack.c.l.b16 %v54
    %v405 = vunpack.c.h.b16 %v54
    %v406 = vunpack.c.l.b16 %v55
    %v407 = vunpack.c.h.b16 %v55
    %v408 = vunpack.c.l.b16 %v56
    %v409 = vunpack.c.h.b16 %v56
    %v410 = vunpack.c.l.b16 %v57
    %v411 = vunpack.c.h.b16 %v57
    %v412 = vunpack.c.l.b16 %v58
    %v413 = vunpack.c.h.b16 %v58
    %v414 = vunpack.c.l.b16 %v59
    %v415 = vunpack.c.h.b16 %v59
    %v416 = vunpack.c.l.b16 %v60
    %v417 = vunpack.c.h.b16 %v60
    %v418 = vunpack.c.l.b16 %v61
    %v419 = vunpack.c.h.b16 %v61
    %v420 = vunpack.c.l.b16 %v62
    %v421 = vunpack.c.h.b16 %v62
    %v422 = vunpack.c.l.b16 %v63
    %v423 = vunpack.c.h.b16 %v63
    %v424 = vunpack.c.l.b16 %v64
    %v425 = vunpack.c.h.b16 %v64
    %v426 = vunpack.c.l.b16 %v65
    %v427 = vunpack.c.h.b16 %v65
    %v428 = vunpack.c.l.b16 %v66
    %v429 = vunpack.c.h.b16 %v66
    %v430 = vunpack.c.l.b16 %v67
    %v431 = vunpack.c.h.b16 %v67
    %v432 = vunpack.c.l.b16 %v68
    %v433 = vunpack.c.h.b16 %v68
    %v434 = vunpack.c.l.b16 %v69
    %v435 = vunpack.c.h.b16 %v69
    %v436 = vunpack.c.l.b16 %v70
    %v437 = vunpack.c.h.b16 %v70
    %v438 = vunpack.c.l.b16 %v71
    %v439 = vunpack.c.h.b16 %v71
    %v440 = vunpack.c.l.b16 %v72
    %v441 = vunpack.c.h.b16 %v72
    %v442 = vunpack.c.l.b16 %v73
    %v443 = vunpack.c.h.b16 %v73
    %v444 = vunpack.c.l.b16 %v74
    %v445 = vunpack.c.h.b16 %v74
    %v446 = vpack.c.b16 %v386, %v382
    %v447 = vpack.c.b16 %v387, %v383
    %v448 = vpack.c.b16 %v388, %v384
    %v449 = vpack.c.b16 %v389, %v385
    %v450 = vpack.c.b16 %v394, %v390
    %v451 = vpack.c.b16 %v395, %v391
    %v452 = vpack.c.b16 %v396, %v392
    %v453 = vpack.c.b16 %v397, %v393
    %v454 = vpack.c.b16 %v402, %v398
    %v455 = vpack.c.b16 %v403, %v399
    %v456 = vpack.c.b16 %v404, %v400
    %v457 = vpack.c.b16 %v405, %v401
    %v458 = vpack.c.b16 %v410, %v406
    %v459 = vpack.c.b16 %v411, %v407
    %v460 = vpack.c.b16 %v412, %v408
    %v461 = vpack.c.b16 %v413, %v409
    %v462 = vpack.c.b16 %v418, %v414
    %v463 = vpack.c.b16 %v419, %v415
    %v464 = vpack.c.b16 %v420, %v416
    %v465 = vpack.c.b16 %v421, %v417
    %v466 = vpack.c.b16 %v426, %v422
    %v467 = vpack.c.b16 %v427, %v423
    %v468 = vpack.c.b16 %v428, %v424
    %v469 = vpack.c.b16 %v429, %v425
    %v470 = vpack.c.b16 %v434, %v430
    %v471 = vpack.c.b16 %v435, %v431
    %v472 = vpack.c.b16 %v436, %v432
    %v473 = vpack.c.b16 %v437, %v433
    %v474 = vpack.c.b16 %v442, %v438
    %v475 = vpack.c.b16 %v443, %v439
    %v476 = vpack.c.b16 %v444, %v440
    %v477 = vpack.c.b16 %v445, %v441
    %510 = vmatprep.subr.bf16.mxu0 %v447
    %511 = vmatpush1.bf16.msra.mxu0 %v446
    %512 = vmatprep.subr.bf16.mxu0 %v451
    %513 = vmatpush1.bf16.msra.mxu0 %v450
    %514 = vmatprep.subr.bf16.mxu0 %v455
    %515 = vmatpush1.bf16.msra.mxu0 %v454
    %516 = vmatprep.subr.bf16.mxu0 %v459
    %517 = vmatpush1.bf16.msra.mxu0 %v458
    %518 = vmatprep.subr.bf16.mxu0 %v463
    %519 = vmatpush1.bf16.msra.mxu0 %v462
    %520 = vmatprep.subr.bf16.mxu0 %v467
    %521 = vmatpush1.bf16.msra.mxu0 %v466
    %522 = vmatprep.subr.bf16.mxu0 %v471
    %523 = vmatpush1.bf16.msra.mxu0 %v470
    %524 = vmatprep.subr.bf16.mxu0 %v475
    %525 = vmatpush1.bf16.msra.mxu0 %v474
    %526 = vmatprep.subr.bf16.mxu0 0
    %527 = vmatpush1.bf16.msra.mxu0 0
    %528 = vmatprep.subr.bf16.mxu0 0
    %529 = vmatpush1.bf16.msra.mxu0 0
    %530 = vmatprep.subr.bf16.mxu0 0
    %531 = vmatpush1.bf16.msra.mxu0 0
    %532 = vmatprep.subr.bf16.mxu0 0
    %533 = vmatpush1.bf16.msra.mxu0 0
    %534 = vmatprep.subr.bf16.mxu0 0
    %535 = vmatpush1.bf16.msra.mxu0 0
    %536 = vmatprep.subr.bf16.mxu0 0
    %537 = vmatpush1.bf16.msra.mxu0 0
    %538 = vmatprep.subr.bf16.mxu0 0
    %539 = vmatpush1.bf16.msra.mxu0 0
    %540 = vmatprep.subr.bf16.mxu0 0
    %541 = vmatpush1.bf16.msra.mxu0 0
    %542 = vmatprep.mubr.bf16.mxu0 0
    %543 = vmatmul.mubr.bf16.gmra.mrb[0].mxu0 %v349
    %v544 = vpop.f32.mrb[0].mxu0
    %v545 = vadd.f32 0.0, %v544
    %v546 = vpop.f32.mrb[0].mxu0
    %v547 = vadd.f32 0.0, %v546
    %v548 = vpop.f32.mrb[0].mxu0
    %v549 = vpop.f32.mrb[0].mxu0
    %550 = vdwg.mxu0
    %551 = vmatprep.subr.bf16.mxu0 %v449
    %552 = vmatpush1.bf16.msra.mxu0 %v448
    %553 = vmatprep.subr.bf16.mxu0 %v453
    %554 = vmatpush1.bf16.msra.mxu0 %v452
    %555 = vmatprep.subr.bf16.mxu0 %v457
    %556 = vmatpush1.bf16.msra.mxu0 %v456
    %557 = vmatprep.subr.bf16.mxu0 %v461
    %558 = vmatpush1.bf16.msra.mxu0 %v460
    %559 = vmatprep.subr.bf16.mxu0 %v465
    %560 = vmatpush1.bf16.msra.mxu0 %v464
    %561 = vmatprep.subr.bf16.mxu0 %v469
    %562 = vmatpush1.bf16.msra.mxu0 %v468
    %563 = vmatprep.subr.bf16.mxu0 %v473
    %564 = vmatpush1.bf16.msra.mxu0 %v472
    %565 = vmatprep.subr.bf16.mxu0 %v477
    %566 = vmatpush1.bf16.msra.mxu0 %v476
    %567 = vmatprep.subr.bf16.mxu0 0
    %568 = vmatpush1.bf16.msra.mxu0 0
    %569 = vmatprep.subr.bf16.mxu0 0
    %570 = vmatpush1.bf16.msra.mxu0 0
    %571 = vmatprep.subr.bf16.mxu0 0
    %572 = vmatpush1.bf16.msra.mxu0 0
    %573 = vmatprep.subr.bf16.mxu0 0
    %574 = vmatpush1.bf16.msra.mxu0 0
    %575 = vmatprep.subr.bf16.mxu0 0
    %576 = vmatpush1.bf16.msra.mxu0 0
    %577 = vmatprep.subr.bf16.mxu0 0
    %578 = vmatpush1.bf16.msra.mxu0 0
    %579 = vmatprep.subr.bf16.mxu0 0
    %580 = vmatpush1.bf16.msra.mxu0 0
    %581 = vmatprep.subr.bf16.mxu0 0
    %582 = vmatpush1.bf16.msra.mxu0 0
    %583 = vmatprep.mubr.bf16.mxu0 0
    %584 = vmatmul.mubr.bf16.gmra.mrb[0].mxu0 %v349
    %v585 = vpop.f32.mrb[0].mxu0
    %v586 = vadd.f32 0.0, %v585
    %v587 = vpop.f32.mrb[0].mxu0
    %v588 = vadd.f32 0.0, %v587
    %v589 = vpop.f32.mrb[0].mxu0
    %v590 = vpop.f32.mrb[0].mxu0
    %591 = vdwg.mxu0
    %v592 = vadd.f32 %v345, %v545
    %v593 = vadd.f32 %v346, %v547
    %v594 = vadd.f32 %v347, %v586
    %v595 = vadd.f32 %v348, %v588
    %v596 = vxor.u32 %v592, 2147483648
    %v597 = vmul.f32 %v596, 1.442695
    %v598 = vpow.pop %v597
    %v599 = vadd.f32 %v598, 1.0
    %v600 = vrcp.pop %v599
    %v601 = vmul.f32 1.0, %v600
    %v602 = vxor.u32 %v593, 2147483648
    %v603 = vmul.f32 %v602, 1.442695
    %v604 = vpow.pop %v603
    %v605 = vadd.f32 %v604, 1.0
    %v606 = vrcp.pop %v605
    %v607 = vmul.f32 1.0, %v606
    %v608 = vtanh.pop %v594
    %v609 = vxor.u32 %v595, 2147483648
    %v610 = vmul.f32 %v609, 1.442695
    %v611 = vpow.pop %v610
    %v612 = vadd.f32 %v611, 1.0
    %v613 = vrcp.pop %v612
    %v614 = vmul.f32 1.0, %v613
    %v615 = vmul.f32 %v607, %v341
    %v616 = vmul.f32 %v601, %v608
    %v617 = vadd.f32 %v615, %v616
    %v618 = vtanh.pop %v617
    %v619 = vmul.f32 %v614, %v618
    %620 = vst [vmem:[#allocation6] sm:$0xff] %v619
    %s621 = smul.u32 1, 4
    %s622 = smul.addr %s621, 8
    %s623 = scalar_lea.vmem [#allocation2], %s622
    %v624 = vld [vmem:[%s623] sm:$0xff]
    %v625 = vld [vmem:[%s623 + $0x8] sm:$0xff]
    %v626 = vld [vmem:[%s623 + $0x10] sm:$0xff]
    %v627 = vld [vmem:[%s623 + $0x18] sm:$0xff]
    %v628 = vpack.c.bf16 %v619, %v619
    %629 = vmatprep.subr.bf16.mxu0 %v447
    %630 = vmatpush1.bf16.msra.mxu0 %v446
    %631 = vmatprep.subr.bf16.mxu0 %v451
    %632 = vmatpush1.bf16.msra.mxu0 %v450
    %633 = vmatprep.subr.bf16.mxu0 %v455
    %634 = vmatpush1.bf16.msra.mxu0 %v454
    %635 = vmatprep.subr.bf16.mxu0 %v459
    %636 = vmatpush1.bf16.msra.mxu0 %v458
    %637 = vmatprep.subr.bf16.mxu0 %v463
    %638 = vmatpush1.bf16.msra.mxu0 %v462
    %639 = vmatprep.subr.bf16.mxu0 %v467
    %640 = vmatpush1.bf16.msra.mxu0 %v466
    %641 = vmatprep.subr.bf16.mxu0 %v471
    %642 = vmatpush1.bf16.msra.mxu0 %v470
    %643 = vmatprep.subr.bf16.mxu0 %v475
    %644 = vmatpush1.bf16.msra.mxu0 %v474
    %645 = vmatprep.subr.bf16.mxu0 0
    %646 = vmatpush1.bf16.msra.mxu0 0
    %647 = vmatprep.subr.bf16.mxu0 0
    %648 = vmatpush1.bf16.msra.mxu0 0
    %649 = vmatprep.subr.bf16.mxu0 0
    %650 = vmatpush1.bf16.msra.mxu0 0
    %651 = vmatprep.subr.bf16.mxu0 0
    %652 = vmatpush1.bf16.msra.mxu0 0
    %653 = vmatprep.subr.bf16.mxu0 0
    %654 = vmatpush1.bf16.msra.mxu0 0
    %655 = vmatprep.subr.bf16.mxu0 0
    %656 = vmatpush1.bf16.msra.mxu0 0
    %657 = vmatprep.subr.bf16.mxu0 0
    %658 = vmatpush1.bf16.msra.mxu0 0
    %659 = vmatprep.subr.bf16.mxu0 0
    %660 = vmatpush1.bf16.msra.mxu0 0
    %661 = vmatprep.mubr.bf16.mxu0 0
    %662 = vmatmul.mubr.bf16.gmra.mrb[0].mxu0 %v628
    %v663 = vpop.f32.mrb[0].mxu0
    %v664 = vadd.f32 0.0, %v663
    %v665 = vpop.f32.mrb[0].mxu0
    %v666 = vadd.f32 0.0, %v665
    %v667 = vpop.f32.mrb[0].mxu0
    %v668 = vpop.f32.mrb[0].mxu0
    %669 = vdwg.mxu0
    %670 = vmatprep.subr.bf16.mxu0 %v449
    %671 = vmatpush1.bf16.msra.mxu0 %v448
    %672 = vmatprep.subr.bf16.mxu0 %v453
    %673 = vmatpush1.bf16.msra.mxu0 %v452
    %674 = vmatprep.subr.bf16.mxu0 %v457
    %675 = vmatpush1.bf16.msra.mxu0 %v456
    %676 = vmatprep.subr.bf16.mxu0 %v461
    %677 = vmatpush1.bf16.msra.mxu0 %v460
    %678 = vmatprep.subr.bf16.mxu0 %v465
    %679 = vmatpush1.bf16.msra.mxu0 %v464
    %680 = vmatprep.subr.bf16.mxu0 %v469
    %681 = vmatpush1.bf16.msra.mxu0 %v468
    %682 = vmatprep.subr.bf16.mxu0 %v473
    %683 = vmatpush1.bf16.msra.mxu0 %v472
    %684 = vmatprep.subr.bf16.mxu0 %v477
    %685 = vmatpush1.bf16.msra.mxu0 %v476
    %686 = vmatprep.subr.bf16.mxu0 0
    %687 = vmatpush1.bf16.msra.mxu0 0
    %688 = vmatprep.subr.bf16.mxu0 0
    %689 = vmatpush1.bf16.msra.mxu0 0
    %690 = vmatprep.subr.bf16.mxu0 0
    %691 = vmatpush1.bf16.msra.mxu0 0
    %692 = vmatprep.subr.bf16.mxu0 0
    %693 = vmatpush1.bf16.msra.mxu0 0
    %694 = vmatprep.subr.bf16.mxu0 0
    %695 = vmatpush1.bf16.msra.mxu0 0
    %696 = vmatprep.subr.bf16.mxu0 0
    %697 = vmatpush1.bf16.msra.mxu0 0
    %698 = vmatprep.subr.bf16.mxu0 0
    %699 = vmatpush1.bf16.msra.mxu0 0
    %700 = vmatprep.subr.bf16.mxu0 0
    %701 = vmatpush1.bf16.msra.mxu0 0
    %702 = vmatprep.mubr.bf16.mxu0 0
    %703 = vmatmul.mubr.bf16.gmra.mrb[0].mxu0 %v628
    %v704 = vpop.f32.mrb[0].mxu0
    %v705 = vadd.f32 0.0, %v704
    %v706 = vpop.f32.mrb[0].mxu0
    %v707 = vadd.f32 0.0, %v706
    %v708 = vpop.f32.mrb[0].mxu0
    %v709 = vpop.f32.mrb[0].mxu0
    %710 = vdwg.mxu0
    %v711 = vadd.f32 %v624, %v664
    %v712 = vadd.f32 %v625, %v666
    %v713 = vadd.f32 %v626, %v705
    %v714 = vadd.f32 %v627, %v707
    %v715 = vxor.u32 %v711, 2147483648
    %v716 = vmul.f32 %v715, 1.442695
    %v717 = vpow.pop %v716
    %v718 = vadd.f32 %v717, 1.0
    %v719 = vrcp.pop %v718
    %v720 = vmul.f32 1.0, %v719
    %v721 = vxor.u32 %v712, 2147483648
    %v722 = vmul.f32 %v721, 1.442695
    %v723 = vpow.pop %v722
    %v724 = vadd.f32 %v723, 1.0
    %v725 = vrcp.pop %v724
    %v726 = vmul.f32 1.0, %v725
    %v727 = vtanh.pop %v713
    %v728 = vxor.u32 %v714, 2147483648
    %v729 = vmul.f32 %v728, 1.442695
    %v730 = vpow.pop %v729
    %v731 = vadd.f32 %v730, 1.0
    %v732 = vrcp.pop %v731
    %v733 = vmul.f32 1.0, %v732
    %v734 = vmul.f32 %v726, %v617
    %v735 = vmul.f32 %v720, %v727
    %v736 = vadd.f32 %v734, %v735
    %v737 = vtanh.pop %v736
    %v738 = vmul.f32 %v733, %v737
    %s739 = scalar_lea.vmem [#allocation6], 8
    %740 = vst [vmem:[%s739] sm:$0xff] %v738
    %s741 = smul.u32 2, 4
    %s742 = smul.addr %s741, 8
    %s743 = scalar_lea.vmem [#allocation2], %s742
    %v744 = vld [vmem:[%s743] sm:$0xff]
    %v745 = vld [vmem:[%s743 + $0x8] sm:$0xff]
    %v746 = vld [vmem:[%s743 + $0x10] sm:$0xff]
    %v747 = vld [vmem:[%s743 + $0x18] sm:$0xff]
    %v748 = vpack.c.bf16 %v738, %v738
    %749 = vmatprep.subr.bf16.mxu0 %v447
    %750 = vmatpush1.bf16.msra.mxu0 %v446
    %751 = vmatprep.subr.bf16.mxu0 %v451
    %752 = vmatpush1.bf16.msra.mxu0 %v450
    %753 = vmatprep.subr.bf16.mxu0 %v455
    %754 = vmatpush1.bf16.msra.mxu0 %v454
    %755 = vmatprep.subr.bf16.mxu0 %v459
    %756 = vmatpush1.bf16.msra.mxu0 %v458
    %757 = vmatprep.subr.bf16.mxu0 %v463
    %758 = vmatpush1.bf16.msra.mxu0 %v462
    %759 = vmatprep.subr.bf16.mxu0 %v467
    %760 = vmatpush1.bf16.msra.mxu0 %v466
    %761 = vmatprep.subr.bf16.mxu0 %v471
    %762 = vmatpush1.bf16.msra.mxu0 %v470
    %763 = vmatprep.subr.bf16.mxu0 %v475
    %764 = vmatpush1.bf16.msra.mxu0 %v474
    %765 = vmatprep.subr.bf16.mxu0 0
    %766 = vmatpush1.bf16.msra.mxu0 0
    %767 = vmatprep.subr.bf16.mxu0 0
    %768 = vmatpush1.bf16.msra.mxu0 0
    %769 = vmatprep.subr.bf16.mxu0 0
    %770 = vmatpush1.bf16.msra.mxu0 0
    %771 = vmatprep.subr.bf16.mxu0 0
    %772 = vmatpush1.bf16.msra.mxu0 0
    %773 = vmatprep.subr.bf16.mxu0 0
    %774 = vmatpush1.bf16.msra.mxu0 0
    %775 = vmatprep.subr.bf16.mxu0 0
    %776 = vmatpush1.bf16.msra.mxu0 0
    %777 = vmatprep.subr.bf16.mxu0 0
    %778 = vmatpush1.bf16.msra.mxu0 0
    %779 = vmatprep.subr.bf16.mxu0 0
    %780 = vmatpush1.bf16.msra.mxu0 0
    %781 = vmatprep.mubr.bf16.mxu0 0
    %782 = vmatmul.mubr.bf16.gmra.mrb[0].mxu0 %v748
    %v783 = vpop.f32.mrb[0].mxu0
    %v784 = vadd.f32 0.0, %v783
    %v785 = vpop.f32.mrb[0].mxu0
    %v786 = vadd.f32 0.0, %v785
    %v787 = vpop.f32.mrb[0].mxu0
    %v788 = vpop.f32.mrb[0].mxu0
    %789 = vdwg.mxu0
    %790 = vmatprep.subr.bf16.mxu0 %v449
    %791 = vmatpush1.bf16.msra.mxu0 %v448
    %792 = vmatprep.subr.bf16.mxu0 %v453
    %793 = vmatpush1.bf16.msra.mxu0 %v452
    %794 = vmatprep.subr.bf16.mxu0 %v457
    %795 = vmatpush1.bf16.msra.mxu0 %v456
    %796 = vmatprep.subr.bf16.mxu0 %v461
    %797 = vmatpush1.bf16.msra.mxu0 %v460
    %798 = vmatprep.subr.bf16.mxu0 %v465
    %799 = vmatpush1.bf16.msra.mxu0 %v464
    %800 = vmatprep.subr.bf16.mxu0 %v469
    %801 = vmatpush1.bf16.msra.mxu0 %v468
    %802 = vmatprep.subr.bf16.mxu0 %v473
    %803 = vmatpush1.bf16.msra.mxu0 %v472
    %804 = vmatprep.subr.bf16.mxu0 %v477
    %805 = vmatpush1.bf16.msra.mxu0 %v476
    %806 = vmatprep.subr.bf16.mxu0 0
    %807 = vmatpush1.bf16.msra.mxu0 0
    %808 = vmatprep.subr.bf16.mxu0 0
    %809 = vmatpush1.bf16.msra.mxu0 0
    %810 = vmatprep.subr.bf16.mxu0 0
    %811 = vmatpush1.bf16.msra.mxu0 0
    %812 = vmatprep.subr.bf16.mxu0 0
    %813 = vmatpush1.bf16.msra.mxu0 0
    %814 = vmatprep.subr.bf16.mxu0 0
    %815 = vmatpush1.bf16.msra.mxu0 0
    %816 = vmatprep.subr.bf16.mxu0 0
    %817 = vmatpush1.bf16.msra.mxu0 0
    %818 = vmatprep.subr.bf16.mxu0 0
    %819 = vmatpush1.bf16.msra.mxu0 0
    %820 = vmatprep.subr.bf16.mxu0 0
    %821 = vmatpush1.bf16.msra.mxu0 0
    %822 = vmatprep.mubr.bf16.mxu0 0
    %823 = vmatmul.mubr.bf16.gmra.mrb[0].mxu0 %v748
    %v824 = vpop.f32.mrb[0].mxu0
    %v825 = vadd.f32 0.0, %v824
    %v826 = vpop.f32.mrb[0].mxu0
    %v827 = vadd.f32 0.0, %v826
    %v828 = vpop.f32.mrb[0].mxu0
    %v829 = vpop.f32.mrb[0].mxu0
    %830 = vdwg.mxu0
    %v831 = vadd.f32 %v744, %v784
    %v832 = vadd.f32 %v745, %v786
    %v833 = vadd.f32 %v746, %v825
    %v834 = vadd.f32 %v747, %v827
    %v835 = vxor.u32 %v831, 2147483648
    %v836 = vmul.f32 %v835, 1.442695
    %v837 = vpow.pop %v836
    %v838 = vadd.f32 %v837, 1.0
    %v839 = vrcp.pop %v838
    %v840 = vmul.f32 1.0, %v839
    %v841 = vxor.u32 %v832, 2147483648
    %v842 = vmul.f32 %v841, 1.442695
    %v843 = vpow.pop %v842
    %v844 = vadd.f32 %v843, 1.0
    %v845 = vrcp.pop %v844
    %v846 = vmul.f32 1.0, %v845
    %v847 = vtanh.pop %v833
    %v848 = vxor.u32 %v834, 2147483648
    %v849 = vmul.f32 %v848, 1.442695
    %v850 = vpow.pop %v849
    %v851 = vadd.f32 %v850, 1.0
    %v852 = vrcp.pop %v851
    %v853 = vmul.f32 1.0, %v852
    %v854 = vmul.f32 %v846, %v736
    %v855 = vmul.f32 %v840, %v847
    %v856 = vadd.f32 %v854, %v855
    %v857 = vtanh.pop %v856
    %v858 = vmul.f32 %v853, %v857
    %s859 = scalar_lea.vmem [#allocation6], 16
    %860 = vst [vmem:[%s859] sm:$0xff] %v858
    %s861 = smul.u32 3, 4
    %s862 = smul.addr %s861, 8
    %s863 = scalar_lea.vmem [#allocation2], %s862
    %v864 = vld [vmem:[%s863] sm:$0xff]
    %v865 = vld [vmem:[%s863 + $0x8] sm:$0xff]
    %v866 = vld [vmem:[%s863 + $0x10] sm:$0xff]
    %v867 = vld [vmem:[%s863 + $0x18] sm:$0xff]
    %v868 = vpack.c.bf16 %v858, %v858
    %869 = vmatprep.subr.bf16.mxu0 %v447
    %870 = vmatpush1.bf16.msra.mxu0 %v446
    %871 = vmatprep.subr.bf16.mxu0 %v451
    %872 = vmatpush1.bf16.msra.mxu0 %v450
    %873 = vmatprep.subr.bf16.mxu0 %v455
    %874 = vmatpush1.bf16.msra.mxu0 %v454
    %875 = vmatprep.subr.bf16.mxu0 %v459
    %876 = vmatpush1.bf16.msra.mxu0 %v458
    %877 = vmatprep.subr.bf16.mxu0 %v463
    %878 = vmatpush1.bf16.msra.mxu0 %v462
    %879 = vmatprep.subr.bf16.mxu0 %v467
    %880 = vmatpush1.bf16.msra.mxu0 %v466
    %881 = vmatprep.subr.bf16.mxu0 %v471
    %882 = vmatpush1.bf16.msra.mxu0 %v470
    %883 = vmatprep.subr.bf16.mxu0 %v475
    %884 = vmatpush1.bf16.msra.mxu0 %v474
    %885 = vmatprep.subr.bf16.mxu0 0
    %886 = vmatpush1.bf16.msra.mxu0 0
    %887 = vmatprep.subr.bf16.mxu0 0
    %888 = vmatpush1.bf16.msra.mxu0 0
    %889 = vmatprep.subr.bf16.mxu0 0
    %890 = vmatpush1.bf16.msra.mxu0 0
    %891 = vmatprep.subr.bf16.mxu0 0
    %892 = vmatpush1.bf16.msra.mxu0 0
    %893 = vmatprep.subr.bf16.mxu0 0
    %894 = vmatpush1.bf16.msra.mxu0 0
    %895 = vmatprep.subr.bf16.mxu0 0
    %896 = vmatpush1.bf16.msra.mxu0 0
    %897 = vmatprep.subr.bf16.mxu0 0
    %898 = vmatpush1.bf16.msra.mxu0 0
    %899 = vmatprep.subr.bf16.mxu0 0
    %900 = vmatpush1.bf16.msra.mxu0 0
    %901 = vmatprep.mubr.bf16.mxu0 0
    %902 = vmatmul.mubr.bf16.gmra.mrb[0].mxu0 %v868
    %v903 = vpop.f32.mrb[0].mxu0
    %v904 = vadd.f32 0.0, %v903
    %v905 = vpop.f32.mrb[0].mxu0
    %v906 = vadd.f32 0.0, %v905
    %v907 = vpop.f32.mrb[0].mxu0
    %v908 = vpop.f32.mrb[0].mxu0
    %909 = vdwg.mxu0
    %910 = vmatprep.subr.bf16.mxu0 %v449
    %911 = vmatpush1.bf16.msra.mxu0 %v448
    %912 = vmatprep.subr.bf16.mxu0 %v453
    %913 = vmatpush1.bf16.msra.mxu0 %v452
    %914 = vmatprep.subr.bf16.mxu0 %v457
    %915 = vmatpush1.bf16.msra.mxu0 %v456
    %916 = vmatprep.subr.bf16.mxu0 %v461
    %917 = vmatpush1.bf16.msra.mxu0 %v460
    %918 = vmatprep.subr.bf16.mxu0 %v465
    %919 = vmatpush1.bf16.msra.mxu0 %v464
    %920 = vmatprep.subr.bf16.mxu0 %v469
    %921 = vmatpush1.bf16.msra.mxu0 %v468
    %922 = vmatprep.subr.bf16.mxu0 %v473
    %923 = vmatpush1.bf16.msra.mxu0 %v472
    %924 = vmatprep.subr.bf16.mxu0 %v477
    %925 = vmatpush1.bf16.msra.mxu0 %v476
    %926 = vmatprep.subr.bf16.mxu0 0
    %927 = vmatpush1.bf16.msra.mxu0 0
    %928 = vmatprep.subr.bf16.mxu0 0
    %929 = vmatpush1.bf16.msra.mxu0 0
    %930 = vmatprep.subr.bf16.mxu0 0
    %931 = vmatpush1.bf16.msra.mxu0 0
    %932 = vmatprep.subr.bf16.mxu0 0
    %933 = vmatpush1.bf16.msra.mxu0 0
    %934 = vmatprep.subr.bf16.mxu0 0
    %935 = vmatpush1.bf16.msra.mxu0 0
    %936 = vmatprep.subr.bf16.mxu0 0
    %937 = vmatpush1.bf16.msra.mxu0 0
    %938 = vmatprep.subr.bf16.mxu0 0
    %939 = vmatpush1.bf16.msra.mxu0 0
    %940 = vmatprep.subr.bf16.mxu0 0
    %941 = vmatpush1.bf16.msra.mxu0 0
    %942 = vmatprep.mubr.bf16.mxu0 0
    %943 = vmatmul.mubr.bf16.gmra.mrb[0].mxu0 %v868
    %v944 = vpop.f32.mrb[0].mxu0
    %v945 = vadd.f32 0.0, %v944
    %v946 = vpop.f32.mrb[0].mxu0
    %v947 = vadd.f32 0.0, %v946
    %v948 = vpop.f32.mrb[0].mxu0
    %v949 = vpop.f32.mrb[0].mxu0
    %950 = vdwg.mxu0
    %v951 = vadd.f32 %v864, %v904
    %v952 = vadd.f32 %v865, %v906
    %v953 = vadd.f32 %v866, %v945
    %v954 = vadd.f32 %v867, %v947
    %v955 = vxor.u32 %v951, 2147483648
    %v956 = vmul.f32 %v955, 1.442695
    %v957 = vpow.pop %v956
    %v958 = vadd.f32 %v957, 1.0
    %v959 = vrcp.pop %v958
    %v960 = vmul.f32 1.0, %v959
    %v961 = vxor.u32 %v952, 2147483648
    %v962 = vmul.f32 %v961, 1.442695
    %v963 = vpow.pop %v962
    %v964 = vadd.f32 %v963, 1.0
    %v965 = vrcp.pop %v964
    %v966 = vmul.f32 1.0, %v965
    %v967 = vtanh.pop %v953
    %v968 = vxor.u32 %v954, 2147483648
    %v969 = vmul.f32 %v968, 1.442695
    %v970 = vpow.pop %v969
    %v971 = vadd.f32 %v970, 1.0
    %v972 = vrcp.pop %v971
    %v973 = vmul.f32 1.0, %v972
    %v974 = vmul.f32 %v966, %v856
    %v975 = vmul.f32 %v960, %v967
    %v976 = vadd.f32 %v974, %v975
    %v977 = vtanh.pop %v976
    %v978 = vmul.f32 %v973, %v977
    %s979 = scalar_lea.vmem [#allocation6], 24
    %980 = vst [vmem:[%s979] sm:$0xff] %v978
    %s981 = smul.u32 4, 4
    %s982 = smul.addr %s981, 8
    %s983 = scalar_lea.vmem [#allocation2], %s982
    %v984 = vld [vmem:[%s983] sm:$0xff]
    %v985 = vld [vmem:[%s983 + $0x8] sm:$0xff]
    %v986 = vld [vmem:[%s983 + $0x10] sm:$0xff]
    %v987 = vld [vmem:[%s983 + $0x18] sm:$0xff]
    %v988 = vpack.c.bf16 %v978, %v978
    %989 = vmatprep.subr.bf16.mxu0 %v447
    %990 = vmatpush1.bf16.msra.mxu0 %v446
    %991 = vmatprep.subr.bf16.mxu0 %v451
    %992 = vmatpush1.bf16.msra.mxu0 %v450
    %993 = vmatprep.subr.bf16.mxu0 %v455
    %994 = vmatpush1.bf16.msra.mxu0 %v454
    %995 = vmatprep.subr.bf16.mxu0 %v459
    %996 = vmatpush1.bf16.msra.mxu0 %v458
    %997 = vmatprep.subr.bf16.mxu0 %v463
    %998 = vmatpush1.bf16.msra.mxu0 %v462
    %999 = vmatprep.subr.bf16.mxu0 %v467
    %1000 = vmatpush1.bf16.msra.mxu0 %v466
    %1001 = vmatprep.subr.bf16.mxu0 %v471
    %1002 = vmatpush1.bf16.msra.mxu0 %v470
    %1003 = vmatprep.subr.bf16.mxu0 %v475
    %1004 = vmatpush1.bf16.msra.mxu0 %v474
    %1005 = vmatprep.subr.bf16.mxu0 0
    %1006 = vmatpush1.bf16.msra.mxu0 0
    %1007 = vmatprep.subr.bf16.mxu0 0
    %1008 = vmatpush1.bf16.msra.mxu0 0
    %1009 = vmatprep.subr.bf16.mxu0 0
    %1010 = vmatpush1.bf16.msra.mxu0 0
    %1011 = vmatprep.subr.bf16.mxu0 0
    %1012 = vmatpush1.bf16.msra.mxu0 0
    %1013 = vmatprep.subr.bf16.mxu0 0
    %1014 = vmatpush1.bf16.msra.mxu0 0
    %1015 = vmatprep.subr.bf16.mxu0 0
    %1016 = vmatpush1.bf16.msra.mxu0 0
    %1017 = vmatprep.subr.bf16.mxu0 0
    %1018 = vmatpush1.bf16.msra.mxu0 0
    %1019 = vmatprep.subr.bf16.mxu0 0
    %1020 = vmatpush1.bf16.msra.mxu0 0
    %1021 = vmatprep.mubr.bf16.mxu0 0
    %1022 = vmatmul.mubr.bf16.gmra.mrb[0].mxu0 %v988
    %v1023 = vpop.f32.mrb[0].mxu0
    %v1024 = vadd.f32 0.0, %v1023
    %v1025 = vpop.f32.mrb[0].mxu0
    %v1026 = vadd.f32 0.0, %v1025
    %v1027 = vpop.f32.mrb[0].mxu0
    %v1028 = vpop.f32.mrb[0].mxu0
    %1029 = vdwg.mxu0
    %1030 = vmatprep.subr.bf16.mxu0 %v449
    %1031 = vmatpush1.bf16.msra.mxu0 %v448
    %1032 = vmatprep.subr.bf16.mxu0 %v453
    %1033 = vmatpush1.bf16.msra.mxu0 %v452
    %1034 = vmatprep.subr.bf16.mxu0 %v457
    %1035 = vmatpush1.bf16.msra.mxu0 %v456
    %1036 = vmatprep.subr.bf16.mxu0 %v461
    %1037 = vmatpush1.bf16.msra.mxu0 %v460
    %1038 = vmatprep.subr.bf16.mxu0 %v465
    %1039 = vmatpush1.bf16.msra.mxu0 %v464
    %1040 = vmatprep.subr.bf16.mxu0 %v469
    %1041 = vmatpush1.bf16.msra.mxu0 %v468
    %1042 = vmatprep.subr.bf16.mxu0 %v473
    %1043 = vmatpush1.bf16.msra.mxu0 %v472
    %1044 = vmatprep.subr.bf16.mxu0 %v477
    %1045 = vmatpush1.bf16.msra.mxu0 %v476
    %1046 = vmatprep.subr.bf16.mxu0 0
    %1047 = vmatpush1.bf16.msra.mxu0 0
    %1048 = vmatprep.subr.bf16.mxu0 0
    %1049 = vmatpush1.bf16.msra.mxu0 0
    %1050 = vmatprep.subr.bf16.mxu0 0
    %1051 = vmatpush1.bf16.msra.mxu0 0
    %1052 = vmatprep.subr.bf16.mxu0 0
    %1053 = vmatpush1.bf16.msra.mxu0 0
    %1054 = vmatprep.subr.bf16.mxu0 0
    %1055 = vmatpush1.bf16.msra.mxu0 0
    %1056 = vmatprep.subr.bf16.mxu0 0
    %1057 = vmatpush1.bf16.msra.mxu0 0
    %1058 = vmatprep.subr.bf16.mxu0 0
    %1059 = vmatpush1.bf16.msra.mxu0 0
    %1060 = vmatprep.subr.bf16.mxu0 0
    %1061 = vmatpush1.bf16.msra.mxu0 0
    %1062 = vmatprep.mubr.bf16.mxu0 0
    %1063 = vmatmul.mubr.bf16.gmra.mrb[0].mxu0 %v988
    %v1064 = vpop.f32.mrb[0].mxu0
    %v1065 = vadd.f32 0.0, %v1064
    %v1066 = vpop.f32.mrb[0].mxu0
    %v1067 = vadd.f32 0.0, %v1066
    %v1068 = vpop.f32.mrb[0].mxu0
    %v1069 = vpop.f32.mrb[0].mxu0
    %1070 = vdwg.mxu0
    %v1071 = vadd.f32 %v984, %v1024
    %v1072 = vadd.f32 %v985, %v1026
    %v1073 = vadd.f32 %v986, %v1065
    %v1074 = vadd.f32 %v987, %v1067
    %v1075 = vxor.u32 %v1071, 2147483648
    %v1076 = vmul.f32 %v1075, 1.442695
    %v1077 = vpow.pop %v1076
    %v1078 = vadd.f32 %v1077, 1.0
    %v1079 = vrcp.pop %v1078
    %v1080 = vmul.f32 1.0, %v1079
    %v1081 = vxor.u32 %v1072, 2147483648
    %v1082 = vmul.f32 %v1081, 1.442695
    %v1083 = vpow.pop %v1082
    %v1084 = vadd.f32 %v1083, 1.0
    %v1085 = vrcp.pop %v1084
    %v1086 = vmul.f32 1.0, %v1085
    %v1087 = vtanh.pop %v1073
    %v1088 = vxor.u32 %v1074, 2147483648
    %v1089 = vmul.f32 %v1088, 1.442695
    %v1090 = vpow.pop %v1089
    %v1091 = vadd.f32 %v1090, 1.0
    %v1092 = vrcp.pop %v1091
    %v1093 = vmul.f32 1.0, %v1092
    %v1094 = vmul.f32 %v1086, %v976
    %v1095 = vmul.f32 %v1080, %v1087
    %v1096 = vadd.f32 %v1094, %v1095
    %v1097 = vtanh.pop %v1096
    %v1098 = vmul.f32 %v1093, %v1097
    %s1099 = scalar_lea.vmem [#allocation6], 32
    %1100 = vst [vmem:[%s1099] sm:$0xff] %v1098
    %s1101 = smul.u32 5, 4
    %s1102 = smul.addr %s1101, 8
    %s1103 = scalar_lea.vmem [#allocation2], %s1102
    %v1104 = vld [vmem:[%s1103] sm:$0xff]
    %v1105 = vld [vmem:[%s1103 + $0x8] sm:$0xff]
    %v1106 = vld [vmem:[%s1103 + $0x10] sm:$0xff]
    %v1107 = vld [vmem:[%s1103 + $0x18] sm:$0xff]
    %v1108 = vpack.c.bf16 %v1098, %v1098
    %1109 = vmatprep.subr.bf16.mxu0 %v447
    %1110 = vmatpush1.bf16.msra.mxu0 %v446
    %1111 = vmatprep.subr.bf16.mxu0 %v451
    %1112 = vmatpush1.bf16.msra.mxu0 %v450
    %1113 = vmatprep.subr.bf16.mxu0 %v455
    %1114 = vmatpush1.bf16.msra.mxu0 %v454
    %1115 = vmatprep.subr.bf16.mxu0 %v459
    %1116 = vmatpush1.bf16.msra.mxu0 %v458
    %1117 = vmatprep.subr.bf16.mxu0 %v463
    %1118 = vmatpush1.bf16.msra.mxu0 %v462
    %1119 = vmatprep.subr.bf16.mxu0 %v467
    %1120 = vmatpush1.bf16.msra.mxu0 %v466
    %1121 = vmatprep.subr.bf16.mxu0 %v471
    %1122 = vmatpush1.bf16.msra.mxu0 %v470
    %1123 = vmatprep.subr.bf16.mxu0 %v475
    %1124 = vmatpush1.bf16.msra.mxu0 %v474
    %1125 = vmatprep.subr.bf16.mxu0 0
    %1126 = vmatpush1.bf16.msra.mxu0 0
    %1127 = vmatprep.subr.bf16.mxu0 0
    %1128 = vmatpush1.bf16.msra.mxu0 0
    %1129 = vmatprep.subr.bf16.mxu0 0
    %1130 = vmatpush1.bf16.msra.mxu0 0
    %1131 = vmatprep.subr.bf16.mxu0 0
    %1132 = vmatpush1.bf16.msra.mxu0 0
    %1133 = vmatprep.subr.bf16.mxu0 0
    %1134 = vmatpush1.bf16.msra.mxu0 0
    %1135 = vmatprep.subr.bf16.mxu0 0
    %1136 = vmatpush1.bf16.msra.mxu0 0
    %1137 = vmatprep.subr.bf16.mxu0 0
    %1138 = vmatpush1.bf16.msra.mxu0 0
    %1139 = vmatprep.subr.bf16.mxu0 0
    %1140 = vmatpush1.bf16.msra.mxu0 0
    %1141 = vmatprep.mubr.bf16.mxu0 0
    %1142 = vmatmul.mubr.bf16.gmra.mrb[0].mxu0 %v1108
    %v1143 = vpop.f32.mrb[0].mxu0
    %v1144 = vadd.f32 0.0, %v1143
    %v1145 = vpop.f32.mrb[0].mxu0
    %v1146 = vadd.f32 0.0, %v1145
    %v1147 = vpop.f32.mrb[0].mxu0
    %v1148 = vpop.f32.mrb[0].mxu0
    %1149 = vdwg.mxu0
    %1150 = vmatprep.subr.bf16.mxu0 %v449
    %1151 = vmatpush1.bf16.msra.mxu0 %v448
    %1152 = vmatprep.subr.bf16.mxu0 %v453
    %1153 = vmatpush1.bf16.msra.mxu0 %v452
    %1154 = vmatprep.subr.bf16.mxu0 %v457
    %1155 = vmatpush1.bf16.msra.mxu0 %v456
    %1156 = vmatprep.subr.bf16.mxu0 %v461
    %1157 = vmatpush1.bf16.msra.mxu0 %v460
    %1158 = vmatprep.subr.bf16.mxu0 %v465
    %1159 = vmatpush1.bf16.msra.mxu0 %v464
    %1160 = vmatprep.subr.bf16.mxu0 %v469
    %1161 = vmatpush1.bf16.msra.mxu0 %v468
    %1162 = vmatprep.subr.bf16.mxu0 %v473
    %1163 = vmatpush1.bf16.msra.mxu0 %v472
    %1164 = vmatprep.subr.bf16.mxu0 %v477
    %1165 = vmatpush1.bf16.msra.mxu0 %v476
    %1166 = vmatprep.subr.bf16.mxu0 0
    %1167 = vmatpush1.bf16.msra.mxu0 0
    %1168 = vmatprep.subr.bf16.mxu0 0
    %1169 = vmatpush1.bf16.msra.mxu0 0
    %1170 = vmatprep.subr.bf16.mxu0 0
    %1171 = vmatpush1.bf16.msra.mxu0 0
    %1172 = vmatprep.subr.bf16.mxu0 0
    %1173 = vmatpush1.bf16.msra.mxu0 0
    %1174 = vmatprep.subr.bf16.mxu0 0
    %1175 = vmatpush1.bf16.msra.mxu0 0
    %1176 = vmatprep.subr.bf16.mxu0 0
    %1177 = vmatpush1.bf16.msra.mxu0 0
    %1178 = vmatprep.subr.bf16.mxu0 0
    %1179 = vmatpush1.bf16.msra.mxu0 0
    %1180 = vmatprep.subr.bf16.mxu0 0
    %1181 = vmatpush1.bf16.msra.mxu0 0
    %1182 = vmatprep.mubr.bf16.mxu0 0
    %1183 = vmatmul.mubr.bf16.gmra.mrb[0].mxu0 %v1108
    %v1184 = vpop.f32.mrb[0].mxu0
    %v1185 = vadd.f32 0.0, %v1184
    %v1186 = vpop.f32.mrb[0].mxu0
    %v1187 = vadd.f32 0.0, %v1186
    %v1188 = vpop.f32.mrb[0].mxu0
    %v1189 = vpop.f32.mrb[0].mxu0
    %1190 = vdwg.mxu0
    %v1191 = vadd.f32 %v1104, %v1144
    %v1192 = vadd.f32 %v1105, %v1146
    %v1193 = vadd.f32 %v1106, %v1185
    %v1194 = vadd.f32 %v1107, %v1187
    %v1195 = vxor.u32 %v1191, 2147483648
    %v1196 = vmul.f32 %v1195, 1.442695
    %v1197 = vpow.pop %v1196
    %v1198 = vadd.f32 %v1197, 1.0
    %v1199 = vrcp.pop %v1198
    %v1200 = vmul.f32 1.0, %v1199
    %v1201 = vxor.u32 %v1192, 2147483648
    %v1202 = vmul.f32 %v1201, 1.442695
    %v1203 = vpow.pop %v1202
    %v1204 = vadd.f32 %v1203, 1.0
    %v1205 = vrcp.pop %v1204
    %v1206 = vmul.f32 1.0, %v1205
    %v1207 = vtanh.pop %v1193
    %v1208 = vxor.u32 %v1194, 2147483648
    %v1209 = vmul.f32 %v1208, 1.442695
    %v1210 = vpow.pop %v1209
    %v1211 = vadd.f32 %v1210, 1.0
    %v1212 = vrcp.pop %v1211
    %v1213 = vmul.f32 1.0, %v1212
    %v1214 = vmul.f32 %v1206, %v1096
    %v1215 = vmul.f32 %v1200, %v1207
    %v1216 = vadd.f32 %v1214, %v1215
    %v1217 = vtanh.pop %v1216
    %v1218 = vmul.f32 %v1213, %v1217
    %s1219 = scalar_lea.vmem [#allocation6], 40
    %1220 = vst [vmem:[%s1219] sm:$0xff] %v1218
    %s1221 = smul.u32 6, 4
    %s1222 = smul.addr %s1221, 8
    %s1223 = scalar_lea.vmem [#allocation2], %s1222
    %v1224 = vld [vmem:[%s1223] sm:$0xff]
    %v1225 = vld [vmem:[%s1223 + $0x8] sm:$0xff]
    %v1226 = vld [vmem:[%s1223 + $0x10] sm:$0xff]
    %v1227 = vld [vmem:[%s1223 + $0x18] sm:$0xff]
    %v1228 = vpack.c.bf16 %v1218, %v1218
    %1229 = vmatprep.subr.bf16.mxu0 %v447
    %1230 = vmatpush1.bf16.msra.mxu0 %v446
    %1231 = vmatprep.subr.bf16.mxu0 %v451
    %1232 = vmatpush1.bf16.msra.mxu0 %v450
    %1233 = vmatprep.subr.bf16.mxu0 %v455
    %1234 = vmatpush1.bf16.msra.mxu0 %v454
    %1235 = vmatprep.subr.bf16.mxu0 %v459
    %1236 = vmatpush1.bf16.msra.mxu0 %v458
    %1237 = vmatprep.subr.bf16.mxu0 %v463
    %1238 = vmatpush1.bf16.msra.mxu0 %v462
    %1239 = vmatprep.subr.bf16.mxu0 %v467
    %1240 = vmatpush1.bf16.msra.mxu0 %v466
    %1241 = vmatprep.subr.bf16.mxu0 %v471
    %1242 = vmatpush1.bf16.msra.mxu0 %v470
    %1243 = vmatprep.subr.bf16.mxu0 %v475
    %1244 = vmatpush1.bf16.msra.mxu0 %v474
    %1245 = vmatprep.subr.bf16.mxu0 0
    %1246 = vmatpush1.bf16.msra.mxu0 0
    %1247 = vmatprep.subr.bf16.mxu0 0
    %1248 = vmatpush1.bf16.msra.mxu0 0
    %1249 = vmatprep.subr.bf16.mxu0 0
    %1250 = vmatpush1.bf16.msra.mxu0 0
    %1251 = vmatprep.subr.bf16.mxu0 0
    %1252 = vmatpush1.bf16.msra.mxu0 0
    %1253 = vmatprep.subr.bf16.mxu0 0
    %1254 = vmatpush1.bf16.msra.mxu0 0
    %1255 = vmatprep.subr.bf16.mxu0 0
    %1256 = vmatpush1.bf16.msra.mxu0 0
    %1257 = vmatprep.subr.bf16.mxu0 0
    %1258 = vmatpush1.bf16.msra.mxu0 0
    %1259 = vmatprep.subr.bf16.mxu0 0
    %1260 = vmatpush1.bf16.msra.mxu0 0
    %1261 = vmatprep.mubr.bf16.mxu0 0
    %1262 = vmatmul.mubr.bf16.gmra.mrb[0].mxu0 %v1228
    %v1263 = vpop.f32.mrb[0].mxu0
    %v1264 = vadd.f32 0.0, %v1263
    %v1265 = vpop.f32.mrb[0].mxu0
    %v1266 = vadd.f32 0.0, %v1265
    %v1267 = vpop.f32.mrb[0].mxu0
    %v1268 = vpop.f32.mrb[0].mxu0
    %1269 = vdwg.mxu0
    %1270 = vmatprep.subr.bf16.mxu0 %v449
    %1271 = vmatpush1.bf16.msra.mxu0 %v448
    %1272 = vmatprep.subr.bf16.mxu0 %v453
    %1273 = vmatpush1.bf16.msra.mxu0 %v452
    %1274 = vmatprep.subr.bf16.mxu0 %v457
    %1275 = vmatpush1.bf16.msra.mxu0 %v456
    %1276 = vmatprep.subr.bf16.mxu0 %v461
    %1277 = vmatpush1.bf16.msra.mxu0 %v460
    %1278 = vmatprep.subr.bf16.mxu0 %v465
    %1279 = vmatpush1.bf16.msra.mxu0 %v464
    %1280 = vmatprep.subr.bf16.mxu0 %v469
    %1281 = vmatpush1.bf16.msra.mxu0 %v468
    %1282 = vmatprep.subr.bf16.mxu0 %v473
    %1283 = vmatpush1.bf16.msra.mxu0 %v472
    %1284 = vmatprep.subr.bf16.mxu0 %v477
    %1285 = vmatpush1.bf16.msra.mxu0 %v476
    %1286 = vmatprep.subr.bf16.mxu0 0
    %1287 = vmatpush1.bf16.msra.mxu0 0
    %1288 = vmatprep.subr.bf16.mxu0 0
    %1289 = vmatpush1.bf16.msra.mxu0 0
    %1290 = vmatprep.subr.bf16.mxu0 0
    %1291 = vmatpush1.bf16.msra.mxu0 0
    %1292 = vmatprep.subr.bf16.mxu0 0
    %1293 = vmatpush1.bf16.msra.mxu0 0
    %1294 = vmatprep.subr.bf16.mxu0 0
    %1295 = vmatpush1.bf16.msra.mxu0 0
    %1296 = vmatprep.subr.bf16.mxu0 0
    %1297 = vmatpush1.bf16.msra.mxu0 0
    %1298 = vmatprep.subr.bf16.mxu0 0
    %1299 = vmatpush1.bf16.msra.mxu0 0
    %1300 = vmatprep.subr.bf16.mxu0 0
    %1301 = vmatpush1.bf16.msra.mxu0 0
    %1302 = vmatprep.mubr.bf16.mxu0 0
    %1303 = vmatmul.mubr.bf16.gmra.mrb[0].mxu0 %v1228
    %v1304 = vpop.f32.mrb[0].mxu0
    %v1305 = vadd.f32 0.0, %v1304
    %v1306 = vpop.f32.mrb[0].mxu0
    %v1307 = vadd.f32 0.0, %v1306
    %v1308 = vpop.f32.mrb[0].mxu0
    %v1309 = vpop.f32.mrb[0].mxu0
    %1310 = vdwg.mxu0
    %v1311 = vadd.f32 %v1224, %v1264
    %v1312 = vadd.f32 %v1225, %v1266
    %v1313 = vadd.f32 %v1226, %v1305
    %v1314 = vadd.f32 %v1227, %v1307
    %v1315 = vxor.u32 %v1311, 2147483648
    %v1316 = vmul.f32 %v1315, 1.442695
    %v1317 = vpow.pop %v1316
    %v1318 = vadd.f32 %v1317, 1.0
    %v1319 = vrcp.pop %v1318
    %v1320 = vmul.f32 1.0, %v1319
    %v1321 = vxor.u32 %v1312, 2147483648
    %v1322 = vmul.f32 %v1321, 1.442695
    %v1323 = vpow.pop %v1322
    %v1324 = vadd.f32 %v1323, 1.0
    %v1325 = vrcp.pop %v1324
    %v1326 = vmul.f32 1.0, %v1325
    %v1327 = vtanh.pop %v1313
    %v1328 = vxor.u32 %v1314, 2147483648
    %v1329 = vmul.f32 %v1328, 1.442695
    %v1330 = vpow.pop %v1329
    %v1331 = vadd.f32 %v1330, 1.0
    %v1332 = vrcp.pop %v1331
    %v1333 = vmul.f32 1.0, %v1332
    %v1334 = vmul.f32 %v1326, %v1216
    %v1335 = vmul.f32 %v1320, %v1327
    %v1336 = vadd.f32 %v1334, %v1335
    %v1337 = vtanh.pop %v1336
    %v1338 = vmul.f32 %v1333, %v1337
    %s1339 = scalar_lea.vmem [#allocation6], 48
    %1340 = vst [vmem:[%s1339] sm:$0xff] %v1338
    %s1341 = smul.u32 7, 4
    %s1342 = smul.addr %s1341, 8
    %s1343 = scalar_lea.vmem [#allocation2], %s1342
    %v1344 = vld [vmem:[%s1343] sm:$0xff]
    %v1345 = vld [vmem:[%s1343 + $0x8] sm:$0xff]
    %v1346 = vld [vmem:[%s1343 + $0x10] sm:$0xff]
    %v1347 = vld [vmem:[%s1343 + $0x18] sm:$0xff]
    %v1348 = vpack.c.bf16 %v1338, %v1338
    %1349 = vmatprep.subr.bf16.mxu0 %v447
    %1350 = vmatpush1.bf16.msra.mxu0 %v446
    %1351 = vmatprep.subr.bf16.mxu0 %v451
    %1352 = vmatpush1.bf16.msra.mxu0 %v450
    %1353 = vmatprep.subr.bf16.mxu0 %v455
    %1354 = vmatpush1.bf16.msra.mxu0 %v454
    %1355 = vmatprep.subr.bf16.mxu0 %v459
    %1356 = vmatpush1.bf16.msra.mxu0 %v458
    %1357 = vmatprep.subr.bf16.mxu0 %v463
    %1358 = vmatpush1.bf16.msra.mxu0 %v462
    %1359 = vmatprep.subr.bf16.mxu0 %v467
    %1360 = vmatpush1.bf16.msra.mxu0 %v466
    %1361 = vmatprep.subr.bf16.mxu0 %v471
    %1362 = vmatpush1.bf16.msra.mxu0 %v470
    %1363 = vmatprep.subr.bf16.mxu0 %v475
    %1364 = vmatpush1.bf16.msra.mxu0 %v474
    %1365 = vmatprep.subr.bf16.mxu0 0
    %1366 = vmatpush1.bf16.msra.mxu0 0
    %1367 = vmatprep.subr.bf16.mxu0 0
    %1368 = vmatpush1.bf16.msra.mxu0 0
    %1369 = vmatprep.subr.bf16.mxu0 0
    %1370 = vmatpush1.bf16.msra.mxu0 0
    %1371 = vmatprep.subr.bf16.mxu0 0
    %1372 = vmatpush1.bf16.msra.mxu0 0
    %1373 = vmatprep.subr.bf16.mxu0 0
    %1374 = vmatpush1.bf16.msra.mxu0 0
    %1375 = vmatprep.subr.bf16.mxu0 0
    %1376 = vmatpush1.bf16.msra.mxu0 0
    %1377 = vmatprep.subr.bf16.mxu0 0
    %1378 = vmatpush1.bf16.msra.mxu0 0
    %1379 = vmatprep.subr.bf16.mxu0 0
    %1380 = vmatpush1.bf16.msra.mxu0 0
    %1381 = vmatprep.mubr.bf16.mxu0 0
    %1382 = vmatmul.mubr.bf16.gmra.mrb[0].mxu0 %v1348
    %v1383 = vpop.f32.mrb[0].mxu0
    %v1384 = vadd.f32 0.0, %v1383
    %v1385 = vpop.f32.mrb[0].mxu0
    %v1386 = vadd.f32 0.0, %v1385
    %v1387 = vpop.f32.mrb[0].mxu0
    %v1388 = vpop.f32.mrb[0].mxu0
    %1389 = vdwg.mxu0
    %1390 = vmatprep.subr.bf16.mxu0 %v449
    %1391 = vmatpush1.bf16.msra.mxu0 %v448
    %1392 = vmatprep.subr.bf16.mxu0 %v453
    %1393 = vmatpush1.bf16.msra.mxu0 %v452
    %1394 = vmatprep.subr.bf16.mxu0 %v457
    %1395 = vmatpush1.bf16.msra.mxu0 %v456
    %1396 = vmatprep.subr.bf16.mxu0 %v461
    %1397 = vmatpush1.bf16.msra.mxu0 %v460
    %1398 = vmatprep.subr.bf16.mxu0 %v465
    %1399 = vmatpush1.bf16.msra.mxu0 %v464
    %1400 = vmatprep.subr.bf16.mxu0 %v469
    %1401 = vmatpush1.bf16.msra.mxu0 %v468
    %1402 = vmatprep.subr.bf16.mxu0 %v473
    %1403 = vmatpush1.bf16.msra.mxu0 %v472
    %1404 = vmatprep.subr.bf16.mxu0 %v477
    %1405 = vmatpush1.bf16.msra.mxu0 %v476
    %1406 = vmatprep.subr.bf16.mxu0 0
    %1407 = vmatpush1.bf16.msra.mxu0 0
    %1408 = vmatprep.subr.bf16.mxu0 0
    %1409 = vmatpush1.bf16.msra.mxu0 0
    %1410 = vmatprep.subr.bf16.mxu0 0
    %1411 = vmatpush1.bf16.msra.mxu0 0
    %1412 = vmatprep.subr.bf16.mxu0 0
    %1413 = vmatpush1.bf16.msra.mxu0 0
    %1414 = vmatprep.subr.bf16.mxu0 0
    %1415 = vmatpush1.bf16.msra.mxu0 0
    %1416 = vmatprep.subr.bf16.mxu0 0
    %1417 = vmatpush1.bf16.msra.mxu0 0
    %1418 = vmatprep.subr.bf16.mxu0 0
    %1419 = vmatpush1.bf16.msra.mxu0 0
    %1420 = vmatprep.subr.bf16.mxu0 0
    %1421 = vmatpush1.bf16.msra.mxu0 0
    %1422 = vmatprep.mubr.bf16.mxu0 0
    %1423 = vmatmul.mubr.bf16.gmra.mrb[0].mxu0 %v1348
    %v1424 = vpop.f32.mrb[0].mxu0
    %v1425 = vadd.f32 0.0, %v1424
    %v1426 = vpop.f32.mrb[0].mxu0
    %v1427 = vadd.f32 0.0, %v1426
    %v1428 = vpop.f32.mrb[0].mxu0
    %v1429 = vpop.f32.mrb[0].mxu0
    %1430 = vdwg.mxu0
    %v1431 = vadd.f32 %v1344, %v1384
    %v1432 = vadd.f32 %v1345, %v1386
    %v1433 = vadd.f32 %v1346, %v1425
    %v1434 = vadd.f32 %v1347, %v1427
    %v1435 = vxor.u32 %v1431, 2147483648
    %v1436 = vmul.f32 %v1435, 1.442695
    %v1437 = vpow.pop %v1436
    %v1438 = vadd.f32 %v1437, 1.0
    %v1439 = vrcp.pop %v1438
    %v1440 = vmul.f32 1.0, %v1439
    %v1441 = vxor.u32 %v1432, 2147483648
    %v1442 = vmul.f32 %v1441, 1.442695
    %v1443 = vpow.pop %v1442
    %v1444 = vadd.f32 %v1443, 1.0
    %v1445 = vrcp.pop %v1444
    %v1446 = vmul.f32 1.0, %v1445
    %v1447 = vtanh.pop %v1433
    %v1448 = vxor.u32 %v1434, 2147483648
    %v1449 = vmul.f32 %v1448, 1.442695
    %v1450 = vpow.pop %v1449
    %v1451 = vadd.f32 %v1450, 1.0
    %v1452 = vrcp.pop %v1451
    %v1453 = vmul.f32 1.0, %v1452
    %v1454 = vmul.f32 %v1446, %v1336
    %v1455 = vmul.f32 %v1440, %v1447
    %v1456 = vadd.f32 %v1454, %v1455
    %v1457 = vtanh.pop %v1456
    %v1458 = vmul.f32 %v1453, %v1457
    %s1459 = scalar_lea.vmem [#allocation6], 56
    %1460 = vst [vmem:[%s1459] sm:$0xff] %v1458
    %1461 = vst [vmem:[#allocation7] sm:$0xff] %v1458
    %1462 = vst [vmem:[#allocation9] sm:$0xff] %v1456
    // Predicated region
    $region26: #{tpu_custom_call.1} parent=1 // pred_check
      _
    $region27: #{tpu_custom_call.1} parent=1 // pred_check_branch
      %1464 = sbr.rel (0) target = $region29
    $region28: #{tpu_custom_call.1} parent=1 // pred_region
      %s1466 = ssub.s32 1024, 1024
      %1467 = vsyncadd [#allocation5], %s1466
      %s1468 = sshll.u32 [#allocation6], 4
      %s1469 = int_to_ptr.vmem [resolvable:$true] %s1468
      %1474 = dma.vmem_to_hbm [thread:$0]  %s1469, 1024, %s4, [#allocation5], 128, 128, 8
    $region29: #{tpu_custom_call.1} parent=1 // pred_fallthru
      _
    // Predicated region
    $region30: #{tpu_custom_call.1} parent=1 // pred_check
      _
    $region31: #{tpu_custom_call.1} parent=1 // pred_check_branch
      %1476 = sbr.rel (0) target = $region33
    $region32: #{tpu_custom_call.1} parent=1 // pred_region
      %s1478 = ssub.s32 128, 128
      %1479 = vsyncadd [#allocation8], %s1478
      %s1481 = sshll.u32 [#allocation7], 4
      %s1482 = int_to_ptr.vmem [resolvable:$true] %s1481
      %1484 = dma.vmem_to_hbm [thread:$0]  %s1482, 128, %s5, [#allocation8]
    $region33: #{tpu_custom_call.1} parent=1 // pred_fallthru
      _
    // Predicated region
    $region34: #{tpu_custom_call.1} parent=1 // pred_check
      _
    $region35: #{tpu_custom_call.1} parent=1 // pred_check_branch
      %1486 = sbr.rel (0) target = $region37
    $region36: #{tpu_custom_call.1} parent=1 // pred_region
      %s1488 = ssub.s32 128, 128
      %1489 = vsyncadd [#allocation8], %s1488
      %s1491 = sshll.u32 [#allocation9], 4
      %s1492 = int_to_ptr.vmem [resolvable:$true] %s1491
      %1494 = dma.vmem_to_hbm [thread:$0]  %s1492, 128, %s6, [#allocation8]
    $region37: #{tpu_custom_call.1} parent=1 // pred_fallthru
      _
    // Predicated region
    $region38: #{tpu_custom_call.1} parent=1 // pred_check
      _
    $region39: #{tpu_custom_call.1} parent=1 // pred_check_branch
      %1496 = sbr.rel (0) target = $region41
    $region40: #{tpu_custom_call.1} parent=1 // pred_region
      %1497 = dma.done [#allocation5], 1024
    $region41: #{tpu_custom_call.1} parent=1 // pred_fallthru
      _
    // Predicated region
    $region42: #{tpu_custom_call.1} parent=1 // pred_check
      _
    $region43: #{tpu_custom_call.1} parent=1 // pred_check_branch
      %1499 = sbr.rel (0) target = $region45
    $region44: #{tpu_custom_call.1} parent=1 // pred_region
      %1500 = dma.done [#allocation8], 128
    $region45: #{tpu_custom_call.1} parent=1 // pred_fallthru
      _
    // Predicated region
    $region46: #{tpu_custom_call.1} parent=1 // pred_check
      _
    $region47: #{tpu_custom_call.1} parent=1 // pred_check_branch
      %1502 = sbr.rel (0) target = $region49
    $region48: #{tpu_custom_call.1} parent=1 // pred_region
      %1503 = dma.done [#allocation8], 128
    $region49: #{tpu_custom_call.1} parent=1 // pred_fallthru
      _
    %1504 = vsyncpa [#allocation4], 1
    %1505 = vsyncpa [#allocation5], 1
    %1506 = vsyncpa [#allocation8], 1

</llo_original>
